<compile_context>
chip_gen: v6e
topology: v6e:2x2x1
jax: 0.10.0
libtpu: 0.0.40
codegen_flags: <defaults>
</compile_context>

<pallas_src>
import functools
import math

import jax
import jax.numpy as jnp
from jax.experimental import pallas as pl
from jax.experimental.pallas import tpu as pltpu


def mha_kernel(*refs, num_heads, d_k, has_mask):
    """One (batch, query-tile) block through the whole multi-head attention."""
    if has_mask:
        (xq_ref, xk_ref, xv_ref, bias_ref,
         wq_ref, bq_ref, wk_ref, bk_ref, wv_ref, bv_ref, wo_ref, bo_ref,
         o_ref, k_scr, v_scr) = refs
    else:
        (xq_ref, xk_ref, xv_ref,
         wq_ref, bq_ref, wk_ref, bk_ref, wv_ref, bv_ref, wo_ref, bo_ref,
         o_ref, k_scr, v_scr) = refs
        bias_ref = None

    f32 = jnp.float32
    bf16 = jnp.bfloat16
    qi = pl.program_id(1)

    def proj(x, w_ref, b_ref):
        # bf16 x bf16 MXU matmul, f32 accumulate, f32 bias add.
        y = jnp.dot(x, w_ref[...], preferred_element_type=f32)
        return y + b_ref[...]

    # Per-batch K/V projections: computed once (first q-tile of each batch),
    # stored in bf16 VMEM scratch and reused for all remaining q-tiles.
    @pl.when(qi == 0)
    def _():
        k_scr[...] = proj(xk_ref[0], wk_ref, bk_ref).astype(bf16)
        v_scr[...] = proj(xv_ref[0], wv_ref, bv_ref).astype(bf16)

    # 1/sqrt(d_k) is already folded into wq/bq by the wrapper; cast once to bf16.
    q = proj(xq_ref[0], wq_ref, bq_ref).astype(bf16)   # (tq, D)
    k = k_scr[...]                                      # (S,  D) bf16
    v = v_scr[...]                                      # (S,  D) bf16

    if has_mask:
        bias = bias_ref[0].astype(f32)                  # (tq, S) additive 0/-1e9

    out_acc = None
    # Static unroll is fine for small H; for H >= 8 switch to lax.fori_loop with
    # a pre-reshaped (H, ., d_k) layout to bound live ranges / avoid sub-128
    # lane slices.
    for hd in range(num_heads):
        lo = hd * d_k
        qh = q[:, lo:lo + d_k]                          # (tq, d_k) bf16
        kh = k[:, lo:lo + d_k]                          # (S,  d_k) bf16
        vh = v[:, lo:lo + d_k]                          # (S,  d_k) bf16

        # scores = (Q / sqrt(d_k)) @ K^T  (contract d_k, no explicit transpose)
        s = jax.lax.dot_general(qh, kh, (((1,), (1,)), ((), ())),
                                preferred_element_type=f32)     # (tq, S) f32
        if has_mask:
            s = s + bias

        # Numerically stable softmax in f32; normalize after the P@V matmul
        # using an EUP approximate reciprocal (off the VALU).
        p = jnp.exp(s - jnp.max(s, axis=-1, keepdims=True))
        denom = jnp.sum(p, axis=-1, keepdims=True)
        ctx = jnp.dot(p.astype(bf16), vh, preferred_element_type=f32)
        ctx = ctx * pl.reciprocal(denom, approx=True)           # (tq, d_k)

        # Output projection decomposed per head: ctx_h @ Wo[h*d_k:(h+1)*d_k, :]
        wo_h = wo_ref[lo:lo + d_k, :]                            # (d_k, D) bf16
        contrib = jnp.dot(ctx.astype(bf16), wo_h, preferred_element_type=f32)
        out_acc = contrib if out_acc is None else out_acc + contrib

    o_ref[0] = (out_acc + bo_ref[...]).astype(o_ref.dtype)


def _vmem_limit_bytes():
    cap = 64 * 1024 * 1024          # conservative fallback (v7x physical)
    try:
        cap = int(pltpu.get_tpu_info().vmem_capacity_bytes)
    except Exception:
        pass
    return int(max(min(cap - 8 * 1024 * 1024, 100 * 1024 * 1024),
                   32 * 1024 * 1024))


def mha_pallas(xq, xk, xv, params, *, num_heads, mask=None, tile_q=256):
    """query/key/value: (B, S, d_model) f32 -> (B, S, d_model) f32."""
    wq, bq, wk, bk, wv, bv, wo, bo = params
    B, S, D = xq.shape
    assert xk.shape == (B, S, D) and xv.shape == (B, S, D)
    assert D % num_heads == 0
    d_k = D // num_heads

    tq = min(tile_q, S)
    assert S % tq == 0, "sequence length must be a multiple of the query tile"

    f32 = jnp.float32
    bf16 = jnp.bfloat16

    # Fold the attention scale into the Q projection (mathematically identical).
    scale = 1.0 / math.sqrt(d_k)
    w_args = [(wq * scale).astype(bf16), wk.astype(bf16),
              wv.astype(bf16), wo.astype(bf16)]                     # (D, D) bf16
    b_args = [(bq * scale).reshape(1, D).astype(f32),
              bk.reshape(1, D).astype(f32),
              bv.reshape(1, D).astype(f32),
              bo.reshape(1, D).astype(f32)]

    # Stream activations as bf16 (the kernel feeds bf16 to the MXU anyway).
    xq_b, xk_b, xv_b = (x.astype(bf16) for x in (xq, xk, xv))

    has_mask = mask is not None

    args = [xq_b, xk_b, xv_b]
    in_specs = [
        pl.BlockSpec((1, tq, D), lambda b, qi: (b, qi, 0)),   # query tile
        pl.BlockSpec((1, S, D), lambda b, qi: (b, 0, 0)),     # full keys (per batch)
        pl.BlockSpec((1, S, D), lambda b, qi: (b, 0, 0)),     # full values (per batch)
    ]
    if has_mask:
        assert mask.shape == (B, S, S)
        # Convert once to an additive bf16 bias (0 / -1e9): halves mask DMA
        # bytes vs int32 and replaces per-head vselects with a single add.
        bias = jnp.where(mask == 0, -1e9, 0.0).astype(bf16)
        args.append(bias)
        in_specs.append(pl.BlockSpec((1, tq, S), lambda b, qi: (b, qi, 0)))

    # Replicated weights/biases: constant index_map -> single-buffer them.
    rep_w = pl.BlockSpec((D, D), lambda b, qi: (0, 0), pipeline_mode=pl.Buffered(1))
    rep_b = pl.BlockSpec((1, D), lambda b, qi: (0, 0), pipeline_mode=pl.Buffered(1))
    for w, b in zip(w_args, b_args):
        args += [w, b]
        in_specs += [rep_w, rep_b]

    out_specs = pl.BlockSpec((1, tq, D), lambda b, qi: (b, qi, 0))

    bytes_accessed = (3 * B * S * D * 2      # bf16 activations in
                      + B * S * D * 4        # f32 output
                      + 4 * D * D * 2        # bf16 weights
                      + 4 * D * 4)           # f32 biases
    if has_mask:
        bytes_accessed += B * S * S * 2      # bf16 additive mask bias
    cost = pl.CostEstimate(
        flops=int(B * (8 * S * D * D + 4 * S * S * D)),
        transcendentals=int(B * num_heads * S * S),
        bytes_accessed=int(bytes_accessed),
    )

    kernel = functools.partial(mha_kernel, num_heads=num_heads, d_k=d_k,
                               has_mask=has_mask)

    return pl.pallas_call(
        kernel,
        out_shape=jax.ShapeDtypeStruct((B, S, D), xq.dtype),
        grid_spec=pltpu.PrefetchScalarGridSpec(
            num_scalar_prefetch=0,
            grid=(B, S // tq),
            in_specs=in_specs,
            out_specs=out_specs,
            scratch_shapes=[pltpu.VMEM((S, D), bf16),   # projected K (per batch)
                            pltpu.VMEM((S, D), bf16)],  # projected V (per batch)
        ),
        compiler_params=pltpu.CompilerParams(
            # batch axis shards across cores; q-tile axis carries the K/V
            # scratch within a batch so it must stay "arbitrary".
            dimension_semantics=("parallel", "arbitrary"),
            vmem_limit_bytes=_vmem_limit_bytes(),
        ),
        cost_estimate=cost,
    )(*args)


def mha_reference(xq, xk, xv, params, num_heads, mask=None):
    """Pure-JAX f32 reference matching the PyTorch forward."""
    wq, bq, wk, bk, wv, bv, wo, bo = params
    B, S, D = xq.shape
    d_k = D // num_heads

    def split_heads(x, w, b):
        y = x @ w + b
        return y.reshape(B, S, num_heads, d_k).transpose(0, 2, 1, 3)

    q = split_heads(xq, wq, bq)
    k = split_heads(xk, wk, bk)
    v = split_heads(xv, wv, bv)
    s = jnp.einsum('bhqd,bhkd->bhqk', q, k) / math.sqrt(d_k)
    if mask is not None:
        s = jnp.where(mask[:, None, :, :] == 0, -1e9, s)
    p = jax.nn.softmax(s, axis=-1)
    ctx = jnp.einsum('bhqk,bhkd->bhqd', p, v)
    ctx = ctx.transpose(0, 2, 1, 3).reshape(B, S, D)
    return ctx @ wo + bo


def init_params(key, d_model):
    """4 x nn.Linear(d_model, d_model): weights stored as (in, out) = W.T, plus bias."""
    params = []
    for _ in range(4):
        key, kw, kb = jax.random.split(key, 3)
        w = jax.random.normal(kw, (d_model, d_model), jnp.float32) / jnp.sqrt(d_model)
        b = 0.1 * jax.random.normal(kb, (d_model,), jnp.float32)
        params += [w, b]
    return params


if __name__ == "__main__":
    key = jax.random.PRNGKey(0)
    B, S, H, D = 2, 16, 4, 32          # d_model=32, 4 heads, d_k=8

    key, kq, kk, kv = jax.random.split(key, 4)
    xq = jax.random.normal(kq, (B, S, D), jnp.float32)
    xk = jax.random.normal(kk, (B, S, D), jnp.float32)
    xv = jax.random.normal(kv, (B, S, D), jnp.float32)
    params = init_params(key, D)

    # tile_q=8 -> two q-tiles per batch, exercising the per-batch K/V scratch reuse.
    run = jax.jit(functools.partial(mha_pallas, num_heads=H, tile_q=8))

    # No-mask path (the module's default call) — maskless kernel variant.
    out = jax.block_until_ready(run(xq, xk, xv, params))
    ref = mha_reference(xq, xk, xv, params, H)
    assert out.shape == (B, S, D), out.shape
    # bf16 MXU inputs with f32 accumulation -> loosened tolerance vs f32 reference.
    assert jnp.allclose(out, ref, atol=5e-2, rtol=5e-2), "mismatch vs reference (no mask)"

    # Masked path (exercises scores.masked_fill(mask == 0, -1e9)).
    causal = jnp.tril(jnp.ones((S, S), jnp.int32))
    mask = jnp.broadcast_to(causal, (B, S, S))
    out_m = jax.block_until_ready(run(xq, xk, xv, params, mask=mask))
    ref_m = mha_reference(xq, xk, xv, params, H, mask=mask)
    assert jnp.allclose(out_m, ref_m, atol=5e-2, rtol=5e-2), "mismatch vs reference (mask)"

    print("KERNEL_OK")
</pallas_src>

<mosaic_0001>
module attributes {stable_mosaic.version = 11 : i64} {
  func.func @mha_kernel(%arg0: i32, %arg1: i32, %arg2: memref<1x8x32xbf16, #tpu.memory_space<vmem>>, %arg3: memref<1x16x32xbf16, #tpu.memory_space<vmem>>, %arg4: memref<1x16x32xbf16, #tpu.memory_space<vmem>>, %arg5: memref<32x32xbf16, #tpu.memory_space<vmem>>, %arg6: memref<1x32xf32, #tpu.memory_space<vmem>>, %arg7: memref<32x32xbf16, #tpu.memory_space<vmem>>, %arg8: memref<1x32xf32, #tpu.memory_space<vmem>>, %arg9: memref<32x32xbf16, #tpu.memory_space<vmem>>, %arg10: memref<1x32xf32, #tpu.memory_space<vmem>>, %arg11: memref<32x32xbf16, #tpu.memory_space<vmem>>, %arg12: memref<1x32xf32, #tpu.memory_space<vmem>>, %arg13: memref<1x8x32xf32, #tpu.memory_space<vmem>>, %arg14: memref<16x32xbf16, #tpu.memory_space<vmem>>, %arg15: memref<16x32xbf16, #tpu.memory_space<vmem>>) attributes {dimension_semantics = [#tpu.dimension_semantics<parallel>, #tpu.dimension_semantics<arbitrary>], iteration_bounds = array<i64: 2, 2>, scalar_prefetch = 0 : i64, scratch_operands = 2 : i64, tpu.core_type = #tpu.core_type<tc>, window_params = [{transform_indices = @transform_0, window_bounds = array<i64: 1, 8, 32>}, {transform_indices = @transform_1, window_bounds = array<i64: 1, 16, 32>}, {transform_indices = @transform_2, window_bounds = array<i64: 1, 16, 32>}, {pipeline_mode = #tpu.pipeline_mode<synchronous>, transform_indices = @transform_3, window_bounds = array<i64: 32, 32>}, {pipeline_mode = #tpu.pipeline_mode<synchronous>, transform_indices = @transform_4, window_bounds = array<i64: 1, 32>}, {pipeline_mode = #tpu.pipeline_mode<synchronous>, transform_indices = @transform_5, window_bounds = array<i64: 32, 32>}, {pipeline_mode = #tpu.pipeline_mode<synchronous>, transform_indices = @transform_6, window_bounds = array<i64: 1, 32>}, {pipeline_mode = #tpu.pipeline_mode<synchronous>, transform_indices = @transform_7, window_bounds = array<i64: 32, 32>}, {pipeline_mode = #tpu.pipeline_mode<synchronous>, transform_indices = @transform_8, window_bounds = array<i64: 1, 32>}, {pipeline_mode = #tpu.pipeline_mode<synchronous>, transform_indices = @transform_9, window_bounds = array<i64: 32, 32>}, {pipeline_mode = #tpu.pipeline_mode<synchronous>, transform_indices = @transform_10, window_bounds = array<i64: 1, 32>}, {transform_indices = @transform_11, window_bounds = array<i64: 1, 8, 32>}]} {
    %c0_i32 = arith.constant 0 : i32
    %0 = arith.cmpi eq, %arg1, %c0_i32 : i32
    %1 = arith.extui %0 : i1 to i32
    %c0_i32_0 = arith.constant 0 : i32
    %2 = arith.cmpi ne, %1, %c0_i32_0 : i32
    scf.if %2 {
      %c0_41 = arith.constant 0 : index
      %c0_42 = arith.constant 0 : index
      %c0_43 = arith.constant 0 : index
      %98 = vector.load %arg3[%c0_41, %c0_42, %c0_43] : memref<1x16x32xbf16, #tpu.memory_space<vmem>>, vector<1x16x32xbf16>
      %99 = vector.shape_cast %98 : vector<1x16x32xbf16> to vector<16x32xbf16>
      %c0_44 = arith.constant 0 : index
      %c0_45 = arith.constant 0 : index
      %100 = vector.load %arg7[%c0_44, %c0_45] : memref<32x32xbf16, #tpu.memory_space<vmem>>, vector<32x32xbf16>
      %cst_46 = arith.constant dense<0.000000e+00> : vector<16x32xf32>
      %101 = tpu.matmul %99, %100, %cst_46 {dimension_numbers = #tpu.dot_dimension_numbers<[1], [0], [0], [1], [0, 0, 1, 1], [], []>} : vector<16x32xbf16>, vector<32x32xbf16>, vector<16x32xf32> -> vector<16x32xf32>
      %c0_47 = arith.constant 0 : index
      %c0_48 = arith.constant 0 : index
      %102 = vector.load %arg8[%c0_47, %c0_48] : memref<1x32xf32, #tpu.memory_space<vmem>>, vector<1x32xf32>
      %103 = vector.broadcast %102 : vector<1x32xf32> to vector<16x32xf32>
      %104 = arith.addf %101, %103 : vector<16x32xf32>
      %105 = arith.truncf %104 : vector<16x32xf32> to vector<16x32xbf16>
      %c0_49 = arith.constant 0 : index
      %c0_50 = arith.constant 0 : index
      %106 = vector.load %arg14[%c0_49, %c0_50] : memref<16x32xbf16, #tpu.memory_space<vmem>>, vector<16x32xbf16>
      tpu.vector_store %arg14[%c0_49, %c0_50], %105 {strides = array<i32>} : memref<16x32xbf16, #tpu.memory_space<vmem>>, vector<16x32xbf16>,
      %c0_51 = arith.constant 0 : index
      %c0_52 = arith.constant 0 : index
      %c0_53 = arith.constant 0 : index
      %107 = vector.load %arg4[%c0_51, %c0_52, %c0_53] : memref<1x16x32xbf16, #tpu.memory_space<vmem>>, vector<1x16x32xbf16>
      %108 = vector.shape_cast %107 : vector<1x16x32xbf16> to vector<16x32xbf16>
      %c0_54 = arith.constant 0 : index
      %c0_55 = arith.constant 0 : index
      %109 = vector.load %arg9[%c0_54, %c0_55] : memref<32x32xbf16, #tpu.memory_space<vmem>>, vector<32x32xbf16>
      %cst_56 = arith.constant dense<0.000000e+00> : vector<16x32xf32>
      %110 = tpu.matmul %108, %109, %cst_56 {dimension_numbers = #tpu.dot_dimension_numbers<[1], [0], [0], [1], [0, 0, 1, 1], [], []>} : vector<16x32xbf16>, vector<32x32xbf16>, vector<16x32xf32> -> vector<16x32xf32>
      %c0_57 = arith.constant 0 : index
      %c0_58 = arith.constant 0 : index
      %111 = vector.load %arg10[%c0_57, %c0_58] : memref<1x32xf32, #tpu.memory_space<vmem>>, vector<1x32xf32>
      %112 = vector.broadcast %111 : vector<1x32xf32> to vector<16x32xf32>
      %113 = arith.addf %110, %112 : vector<16x32xf32>
      %114 = arith.truncf %113 : vector<16x32xf32> to vector<16x32xbf16>
      %c0_59 = arith.constant 0 : index
      %c0_60 = arith.constant 0 : index
      %115 = vector.load %arg15[%c0_59, %c0_60] : memref<16x32xbf16, #tpu.memory_space<vmem>>, vector<16x32xbf16>
      tpu.vector_store %arg15[%c0_59, %c0_60], %114 {strides = array<i32>} : memref<16x32xbf16, #tpu.memory_space<vmem>>, vector<16x32xbf16>,
    } else {
    }
    %c0 = arith.constant 0 : index
    %c0_1 = arith.constant 0 : index
    %c0_2 = arith.constant 0 : index
    %3 = vector.load %arg2[%c0, %c0_1, %c0_2] : memref<1x8x32xbf16, #tpu.memory_space<vmem>>, vector<1x8x32xbf16>
    %4 = vector.shape_cast %3 : vector<1x8x32xbf16> to vector<8x32xbf16>
    %c0_3 = arith.constant 0 : index
    %c0_4 = arith.constant 0 : index
    %5 = vector.load %arg5[%c0_3, %c0_4] : memref<32x32xbf16, #tpu.memory_space<vmem>>, vector<32x32xbf16>
    %cst = arith.constant dense<0.000000e+00> : vector<8x32xf32>
    %6 = tpu.matmul %4, %5, %cst {dimension_numbers = #tpu.dot_dimension_numbers<[1], [0], [0], [1], [0, 0, 1, 1], [], []>} : vector<8x32xbf16>, vector<32x32xbf16>, vector<8x32xf32> -> vector<8x32xf32>
    %c0_5 = arith.constant 0 : index
    %c0_6 = arith.constant 0 : index
    %7 = vector.load %arg6[%c0_5, %c0_6] : memref<1x32xf32, #tpu.memory_space<vmem>>, vector<1x32xf32>
    %8 = vector.broadcast %7 : vector<1x32xf32> to vector<8x32xf32>
    %9 = arith.addf %6, %8 : vector<8x32xf32>
    %10 = arith.truncf %9 : vector<8x32xf32> to vector<8x32xbf16>
    %c0_7 = arith.constant 0 : index
    %c0_8 = arith.constant 0 : index
    %11 = vector.load %arg14[%c0_7, %c0_8] : memref<16x32xbf16, #tpu.memory_space<vmem>>, vector<16x32xbf16>
    %c0_9 = arith.constant 0 : index
    %c0_10 = arith.constant 0 : index
    %12 = vector.load %arg15[%c0_9, %c0_10] : memref<16x32xbf16, #tpu.memory_space<vmem>>, vector<16x32xbf16>
    %13 = vector.extract_strided_slice %10 {offsets = [0, 0], sizes = [8, 8], strides = [1, 1]} : vector<8x32xbf16> to vector<8x8xbf16>
    %14 = vector.extract_strided_slice %11 {offsets = [0, 0], sizes = [16, 8], strides = [1, 1]} : vector<16x32xbf16> to vector<16x8xbf16>
    %15 = vector.extract_strided_slice %12 {offsets = [0, 0], sizes = [16, 8], strides = [1, 1]} : vector<16x32xbf16> to vector<16x8xbf16>
    %cst_11 = arith.constant dense<0.000000e+00> : vector<8x16xf32>
    %16 = tpu.matmul %13, %14, %cst_11 {dimension_numbers = #tpu.dot_dimension_numbers<[1], [1], [0], [0], [0, 0, 1, 0], [], []>} : vector<8x8xbf16>, vector<16x8xbf16>, vector<8x16xf32> -> vector<8x16xf32>
    %cst_12 = arith.constant dense<0xFF800000> : vector<8xf32>
    %17 = vector.multi_reduction <maximumf>, %16, %cst_12 [1] : vector<8x16xf32> to vector<8xf32>
    %18 = vector.shape_cast %17 : vector<8xf32> to vector<8x1xf32>
    %19 = vector.broadcast %18 : vector<8x1xf32> to vector<8x16xf32>
    %20 = arith.subf %16, %19 : vector<8x16xf32>
    %21 = math.exp %20 : vector<8x16xf32>
    %cst_13 = arith.constant dense<0.000000e+00> : vector<8xf32>
    %22 = vector.multi_reduction <add>, %21, %cst_13 [1] : vector<8x16xf32> to vector<8xf32>
    %23 = vector.shape_cast %22 : vector<8xf32> to vector<8x1xf32>
    %24 = arith.truncf %21 : vector<8x16xf32> to vector<8x16xbf16>
    %cst_14 = arith.constant dense<0.000000e+00> : vector<8x8xf32>
    %25 = tpu.matmul %24, %15, %cst_14 {dimension_numbers = #tpu.dot_dimension_numbers<[1], [0], [0], [1], [0, 0, 1, 1], [], []>} : vector<8x16xbf16>, vector<16x8xbf16>, vector<8x8xf32> -> vector<8x8xf32>
    %26 = tpu.reciprocal %23 {approx = true} : vector<8x1xf32> -> vector<8x1xf32>
    %27 = vector.broadcast %26 : vector<8x1xf32> to vector<8x8xf32>
    %28 = arith.mulf %25, %27 : vector<8x8xf32>
    %c0_15 = arith.constant 0 : index
    %c0_16 = arith.constant 0 : index
    %29 = vector.load %arg11[%c0_15, %c0_16] : memref<32x32xbf16, #tpu.memory_space<vmem>>, vector<8x32xbf16>
    %30 = arith.truncf %28 : vector<8x8xf32> to vector<8x8xbf16>
    %cst_17 = arith.constant dense<0.000000e+00> : vector<8x32xf32>
    %31 = tpu.matmul %30, %29, %cst_17 {dimension_numbers = #tpu.dot_dimension_numbers<[1], [0], [0], [1], [0, 0, 1, 1], [], []>} : vector<8x8xbf16>, vector<8x32xbf16>, vector<8x32xf32> -> vector<8x32xf32>
    %32 = vector.extract_strided_slice %10 {offsets = [0, 8], sizes = [8, 8], strides = [1, 1]} : vector<8x32xbf16> to vector<8x8xbf16>
    %33 = vector.extract_strided_slice %11 {offsets = [0, 8], sizes = [16, 8], strides = [1, 1]} : vector<16x32xbf16> to vector<16x8xbf16>
    %34 = vector.extract_strided_slice %12 {offsets = [0, 8], sizes = [16, 8], strides = [1, 1]} : vector<16x32xbf16> to vector<16x8xbf16>
    %cst_18 = arith.constant dense<0.000000e+00> : vector<8x16xf32>
    %35 = tpu.matmul %32, %33, %cst_18 {dimension_numbers = #tpu.dot_dimension_numbers<[1], [1], [0], [0], [0, 0, 1, 0], [], []>} : vector<8x8xbf16>, vector<16x8xbf16>, vector<8x16xf32> -> vector<8x16xf32>
    %cst_19 = arith.constant dense<0xFF800000> : vector<8xf32>
    %36 = vector.multi_reduction <maximumf>, %35, %cst_19 [1] : vector<8x16xf32> to vector<8xf32>
    %37 = vector.shape_cast %36 : vector<8xf32> to vector<8x1xf32>
    %38 = vector.broadcast %37 : vector<8x1xf32> to vector<8x16xf32>
    %39 = arith.subf %35, %38 : vector<8x16xf32>
    %40 = math.exp %39 : vector<8x16xf32>
    %cst_20 = arith.constant dense<0.000000e+00> : vector<8xf32>
    %41 = vector.multi_reduction <add>, %40, %cst_20 [1] : vector<8x16xf32> to vector<8xf32>
    %42 = vector.shape_cast %41 : vector<8xf32> to vector<8x1xf32>
    %43 = arith.truncf %40 : vector<8x16xf32> to vector<8x16xbf16>
    %cst_21 = arith.constant dense<0.000000e+00> : vector<8x8xf32>
    %44 = tpu.matmul %43, %34, %cst_21 {dimension_numbers = #tpu.dot_dimension_numbers<[1], [0], [0], [1], [0, 0, 1, 1], [], []>} : vector<8x16xbf16>, vector<16x8xbf16>, vector<8x8xf32> -> vector<8x8xf32>
    %45 = tpu.reciprocal %42 {approx = true} : vector<8x1xf32> -> vector<8x1xf32>
    %46 = vector.broadcast %45 : vector<8x1xf32> to vector<8x8xf32>
    %47 = arith.mulf %44, %46 : vector<8x8xf32>
    %c8 = arith.constant 8 : index
    %c0_22 = arith.constant 0 : index
    %48 = vector.load %arg11[%c8, %c0_22] : memref<32x32xbf16, #tpu.memory_space<vmem>>, vector<8x32xbf16>
    %49 = arith.truncf %47 : vector<8x8xf32> to vector<8x8xbf16>
    %cst_23 = arith.constant dense<0.000000e+00> : vector<8x32xf32>
    %50 = tpu.matmul %49, %48, %cst_23 {dimension_numbers = #tpu.dot_dimension_numbers<[1], [0], [0], [1], [0, 0, 1, 1], [], []>} : vector<8x8xbf16>, vector<8x32xbf16>, vector<8x32xf32> -> vector<8x32xf32>
    %51 = arith.addf %31, %50 : vector<8x32xf32>
    %52 = vector.extract_strided_slice %10 {offsets = [0, 16], sizes = [8, 8], strides = [1, 1]} : vector<8x32xbf16> to vector<8x8xbf16>
    %53 = vector.extract_strided_slice %11 {offsets = [0, 16], sizes = [16, 8], strides = [1, 1]} : vector<16x32xbf16> to vector<16x8xbf16>
    %54 = vector.extract_strided_slice %12 {offsets = [0, 16], sizes = [16, 8], strides = [1, 1]} : vector<16x32xbf16> to vector<16x8xbf16>
    %cst_24 = arith.constant dense<0.000000e+00> : vector<8x16xf32>
    %55 = tpu.matmul %52, %53, %cst_24 {dimension_numbers = #tpu.dot_dimension_numbers<[1], [1], [0], [0], [0, 0, 1, 0], [], []>} : vector<8x8xbf16>, vector<16x8xbf16>, vector<8x16xf32> -> vector<8x16xf32>
    %cst_25 = arith.constant dense<0xFF800000> : vector<8xf32>
    %56 = vector.multi_reduction <maximumf>, %55, %cst_25 [1] : vector<8x16xf32> to vector<8xf32>
    %57 = vector.shape_cast %56 : vector<8xf32> to vector<8x1xf32>
    %58 = vector.broadcast %57 : vector<8x1xf32> to vector<8x16xf32>
    %59 = arith.subf %55, %58 : vector<8x16xf32>
    %60 = math.exp %59 : vector<8x16xf32>
    %cst_26 = arith.constant dense<0.000000e+00> : vector<8xf32>
    %61 = vector.multi_reduction <add>, %60, %cst_26 [1] : vector<8x16xf32> to vector<8xf32>
    %62 = vector.shape_cast %61 : vector<8xf32> to vector<8x1xf32>
    %63 = arith.truncf %60 : vector<8x16xf32> to vector<8x16xbf16>
    %cst_27 = arith.constant dense<0.000000e+00> : vector<8x8xf32>
    %64 = tpu.matmul %63, %54, %cst_27 {dimension_numbers = #tpu.dot_dimension_numbers<[1], [0], [0], [1], [0, 0, 1, 1], [], []>} : vector<8x16xbf16>, vector<16x8xbf16>, vector<8x8xf32> -> vector<8x8xf32>
    %65 = tpu.reciprocal %62 {approx = true} : vector<8x1xf32> -> vector<8x1xf32>
    %66 = vector.broadcast %65 : vector<8x1xf32> to vector<8x8xf32>
    %67 = arith.mulf %64, %66 : vector<8x8xf32>
    %c16 = arith.constant 16 : index
    %c0_28 = arith.constant 0 : index
    %68 = vector.load %arg11[%c16, %c0_28] : memref<32x32xbf16, #tpu.memory_space<vmem>>, vector<8x32xbf16>
    %69 = arith.truncf %67 : vector<8x8xf32> to vector<8x8xbf16>
    %cst_29 = arith.constant dense<0.000000e+00> : vector<8x32xf32>
    %70 = tpu.matmul %69, %68, %cst_29 {dimension_numbers = #tpu.dot_dimension_numbers<[1], [0], [0], [1], [0, 0, 1, 1], [], []>} : vector<8x8xbf16>, vector<8x32xbf16>, vector<8x32xf32> -> vector<8x32xf32>
    %71 = arith.addf %51, %70 : vector<8x32xf32>
    %72 = vector.extract_strided_slice %10 {offsets = [0, 24], sizes = [8, 8], strides = [1, 1]} : vector<8x32xbf16> to vector<8x8xbf16>
    %73 = vector.extract_strided_slice %11 {offsets = [0, 24], sizes = [16, 8], strides = [1, 1]} : vector<16x32xbf16> to vector<16x8xbf16>
    %74 = vector.extract_strided_slice %12 {offsets = [0, 24], sizes = [16, 8], strides = [1, 1]} : vector<16x32xbf16> to vector<16x8xbf16>
    %cst_30 = arith.constant dense<0.000000e+00> : vector<8x16xf32>
    %75 = tpu.matmul %72, %73, %cst_30 {dimension_numbers = #tpu.dot_dimension_numbers<[1], [1], [0], [0], [0, 0, 1, 0], [], []>} : vector<8x8xbf16>, vector<16x8xbf16>, vector<8x16xf32> -> vector<8x16xf32>
    %cst_31 = arith.constant dense<0xFF800000> : vector<8xf32>
    %76 = vector.multi_reduction <maximumf>, %75, %cst_31 [1] : vector<8x16xf32> to vector<8xf32>
    %77 = vector.shape_cast %76 : vector<8xf32> to vector<8x1xf32>
    %78 = vector.broadcast %77 : vector<8x1xf32> to vector<8x16xf32>
    %79 = arith.subf %75, %78 : vector<8x16xf32>
    %80 = math.exp %79 : vector<8x16xf32>
    %cst_32 = arith.constant dense<0.000000e+00> : vector<8xf32>
    %81 = vector.multi_reduction <add>, %80, %cst_32 [1] : vector<8x16xf32> to vector<8xf32>
    %82 = vector.shape_cast %81 : vector<8xf32> to vector<8x1xf32>
    %83 = arith.truncf %80 : vector<8x16xf32> to vector<8x16xbf16>
    %cst_33 = arith.constant dense<0.000000e+00> : vector<8x8xf32>
    %84 = tpu.matmul %83, %74, %cst_33 {dimension_numbers = #tpu.dot_dimension_numbers<[1], [0], [0], [1], [0, 0, 1, 1], [], []>} : vector<8x16xbf16>, vector<16x8xbf16>, vector<8x8xf32> -> vector<8x8xf32>
    %85 = tpu.reciprocal %82 {approx = true} : vector<8x1xf32> -> vector<8x1xf32>
    %86 = vector.broadcast %85 : vector<8x1xf32> to vector<8x8xf32>
    %87 = arith.mulf %84, %86 : vector<8x8xf32>
    %c24 = arith.constant 24 : index
    %c0_34 = arith.constant 0 : index
    %88 = vector.load %arg11[%c24, %c0_34] : memref<32x32xbf16, #tpu.memory_space<vmem>>, vector<8x32xbf16>
    %89 = arith.truncf %87 : vector<8x8xf32> to vector<8x8xbf16>
    %cst_35 = arith.constant dense<0.000000e+00> : vector<8x32xf32>
    %90 = tpu.matmul %89, %88, %cst_35 {dimension_numbers = #tpu.dot_dimension_numbers<[1], [0], [0], [1], [0, 0, 1, 1], [], []>} : vector<8x8xbf16>, vector<8x32xbf16>, vector<8x32xf32> -> vector<8x32xf32>
    %91 = arith.addf %71, %90 : vector<8x32xf32>
    %c0_36 = arith.constant 0 : index
    %c0_37 = arith.constant 0 : index
    %92 = vector.load %arg12[%c0_36, %c0_37] : memref<1x32xf32, #tpu.memory_space<vmem>>, vector<1x32xf32>
    %93 = vector.broadcast %92 : vector<1x32xf32> to vector<8x32xf32>
    %94 = arith.addf %91, %93 : vector<8x32xf32>
    %c0_38 = arith.constant 0 : index
    %c0_39 = arith.constant 0 : index
    %c0_40 = arith.constant 0 : index
    %95 = vector.load %arg13[%c0_38, %c0_39, %c0_40] : memref<1x8x32xf32, #tpu.memory_space<vmem>>, vector<1x8x32xf32>
    %96 = vector.shape_cast %95 : vector<1x8x32xf32> to vector<8x32xf32>
    %97 = vector.shape_cast %94 : vector<8x32xf32> to vector<1x8x32xf32>
    tpu.vector_store %arg13[%c0_38, %c0_39, %c0_40], %97 {strides = array<i32>} : memref<1x8x32xf32, #tpu.memory_space<vmem>>, vector<1x8x32xf32>,
    return
  }
  func.func @transform_0(%arg0: i32, %arg1: i32) -> (i32, i32, i32) {
    %c0_i32 = arith.constant 0 : i32
    %c0_i32_0 = arith.constant 0 : i32
    return %arg0, %arg1, %c0_i32 : i32, i32, i32
  }
  func.func @transform_1(%arg0: i32, %arg1: i32) -> (i32, i32, i32) {
    %c0_i32 = arith.constant 0 : i32
    %c0_i32_0 = arith.constant 0 : i32
    %c0_i32_1 = arith.constant 0 : i32
    return %arg0, %c0_i32, %c0_i32_0 : i32, i32, i32
  }
  func.func @transform_2(%arg0: i32, %arg1: i32) -> (i32, i32, i32) {
    %c0_i32 = arith.constant 0 : i32
    %c0_i32_0 = arith.constant 0 : i32
    %c0_i32_1 = arith.constant 0 : i32
    return %arg0, %c0_i32, %c0_i32_0 : i32, i32, i32
  }
  func.func @transform_3(%arg0: i32, %arg1: i32) -> (i32, i32) {
    %c0_i32 = arith.constant 0 : i32
    %c0_i32_0 = arith.constant 0 : i32
    %c0_i32_1 = arith.constant 0 : i32
    return %c0_i32, %c0_i32_0 : i32, i32
  }
  func.func @transform_4(%arg0: i32, %arg1: i32) -> (i32, i32) {
    %c0_i32 = arith.constant 0 : i32
    %c0_i32_0 = arith.constant 0 : i32
    %c0_i32_1 = arith.constant 0 : i32
    return %c0_i32, %c0_i32_0 : i32, i32
  }
  func.func @transform_5(%arg0: i32, %arg1: i32) -> (i32, i32) {
    %c0_i32 = arith.constant 0 : i32
    %c0_i32_0 = arith.constant 0 : i32
    %c0_i32_1 = arith.constant 0 : i32
    return %c0_i32, %c0_i32_0 : i32, i32
  }
  func.func @transform_6(%arg0: i32, %arg1: i32) -> (i32, i32) {
    %c0_i32 = arith.constant 0 : i32
    %c0_i32_0 = arith.constant 0 : i32
    %c0_i32_1 = arith.constant 0 : i32
    return %c0_i32, %c0_i32_0 : i32, i32
  }
  func.func @transform_7(%arg0: i32, %arg1: i32) -> (i32, i32) {
    %c0_i32 = arith.constant 0 : i32
    %c0_i32_0 = arith.constant 0 : i32
    %c0_i32_1 = arith.constant 0 : i32
    return %c0_i32, %c0_i32_0 : i32, i32
  }
  func.func @transform_8(%arg0: i32, %arg1: i32) -> (i32, i32) {
    %c0_i32 = arith.constant 0 : i32
    %c0_i32_0 = arith.constant 0 : i32
    %c0_i32_1 = arith.constant 0 : i32
    return %c0_i32, %c0_i32_0 : i32, i32
  }
  func.func @transform_9(%arg0: i32, %arg1: i32) -> (i32, i32) {
    %c0_i32 = arith.constant 0 : i32
    %c0_i32_0 = arith.constant 0 : i32
    %c0_i32_1 = arith.constant 0 : i32
    return %c0_i32, %c0_i32_0 : i32, i32
  }
  func.func @transform_10(%arg0: i32, %arg1: i32) -> (i32, i32) {
    %c0_i32 = arith.constant 0 : i32
    %c0_i32_0 = arith.constant 0 : i32
    %c0_i32_1 = arith.constant 0 : i32
    return %c0_i32, %c0_i32_0 : i32, i32
  }
  func.func @transform_11(%arg0: i32, %arg1: i32) -> (i32, i32, i32) {
    %c0_i32 = arith.constant 0 : i32
    %c0_i32_0 = arith.constant 0 : i32
    return %arg0, %arg1, %c0_i32 : i32, i32, i32
  }
}

</mosaic_0001>

<llo_original>
// kernel: mha_pallas.1
$region0: #{mha_pallas.1}
  #allocation0 [shape = 'u32[]', space=smem, size = 0x4, offset = 0x4, fixed_abs, tag = 'smem constant byte address 0x4 - core index']
  #allocation1 [shape = 'u32[144,128]{1,0:T(1,128)}', space=vmem, size = 0x12000, scoped, tag = 'internal scratch']
  #allocation2 [shape = 'bf16[16,32]{1,0:T(8,128)(2,1)}', space=vmem, size = 0x1000, scoped, tag = 'scratch operand']
  #allocation3 [shape = 'bf16[16,32]{1,0:T(8,128)(2,1)}', space=vmem, size = 0x1000, scoped, tag = 'scratch operand']
  %s0 = inlined_call_operand.vmem [shape: bf16[2,16,32], index: 0, kind: input, shape index: {}]
  %s1 = inlined_call_operand.vmem [shape: bf16[2,16,32], index: 1, kind: input, shape index: {}]
  %s2 = inlined_call_operand.vmem [shape: bf16[2,16,32], index: 2, kind: input, shape index: {}]
  %s3 = inlined_call_operand.vmem [shape: bf16[32,32], index: 3, kind: input, shape index: {}]
  %s4 = inlined_call_operand.vmem [shape: f32[1,32], index: 4, kind: input, shape index: {}]
  %s5 = inlined_call_operand.vmem [shape: bf16[32,32], index: 5, kind: input, shape index: {}]
  %s6 = inlined_call_operand.vmem [shape: f32[1,32], index: 6, kind: input, shape index: {}]
  %s7 = inlined_call_operand.vmem [shape: bf16[32,32], index: 7, kind: input, shape index: {}]
  %s8 = inlined_call_operand.vmem [shape: f32[1,32], index: 8, kind: input, shape index: {}]
  %s9 = inlined_call_operand.vmem [shape: bf16[32,32], index: 9, kind: input, shape index: {}]
  %s10 = inlined_call_operand.vmem [shape: f32[1,32], index: 10, kind: input, shape index: {}]
  %s11 = inlined_call_operand.hbm [shape: f32[2,16,32], index: 11, kind: output, shape index: {}]
  %s12 = sld [smem:[#allocation0]]
  $region81: #{mha_pallas.1} parent=0
    _
  %s14 = ssub.s32 1, %s12
  %s15 = scalar_select 0, %s14, %s12
  $region1: #{mha_pallas.1} parent=0
    #allocation4 [shape = 'u8[8192]{0}', space=vmem, size = 0x2000, scoped, tag = 'output window, operand 0']
    #allocation5 [shape = 's32[2]{0}', space=sflag, size = 0x8, scoped, tag = 'scoped memory for mha_pallas.1']
    %16 = vsyncpa [#allocation5], 0
    %s17 = scalar_lea.sflag [#allocation5], 1
    %18 = vsyncpa %s17, 0
    loop: start=0, step=1, limit=6
    $region2: #{mha_pallas.1} parent=1 // loop_pre_header
      _
    $region3: #{mha_pallas.1} parent=1 // loop_header
      %s20 = sphi 0, %s24
      %p21 = scmp.ge.s32.totalorder %s20, 6
      %s27 = sphi 0, %s39
      %s28 = sphi 0, %s35
      %s29 = sphi 0, %s27
      %s30 = sphi 0, %s28
      %s31 = sphi 0, %s29
      %s32 = sphi 0, %s30
      %s44 = sphi 0, %s46
      %s47 = sphi 0, %s44
      %s48 = sphi 0, %s47
      %s64 = sphi 0, %s48
      %s70 = sphi 0, %s72
      %s73 = sphi 0, %s70
      %s74 = sphi 0, %s73
      %s90 = sphi 0, %s74
      %s96 = sphi 0, %s98
      %s99 = sphi 0, %s96
      %s100 = sphi 0, %s99
      %s116 = sphi 0, %s100
      %s120 = sphi 0, %s120
      %s122 = sphi 0, %s120
      %s123 = sphi 0, %s122
      %s137 = sphi 0, %s123
      %s141 = sphi 0, %s141
      %s143 = sphi 0, %s141
      %s144 = sphi 0, %s143
      %s158 = sphi 0, %s144
      %s162 = sphi 0, %s162
      %s164 = sphi 0, %s162
      %s165 = sphi 0, %s164
      %s179 = sphi 0, %s165
      %s183 = sphi 0, %s183
      %s185 = sphi 0, %s183
      %s186 = sphi 0, %s185
      %s200 = sphi 0, %s186
      %s204 = sphi 0, %s204
      %s206 = sphi 0, %s204
      %s207 = sphi 0, %s206
      %s221 = sphi 0, %s207
      %s225 = sphi 0, %s225
      %s227 = sphi 0, %s225
      %s228 = sphi 0, %s227
      %s242 = sphi 0, %s228
      %s246 = sphi 0, %s246
      %s248 = sphi 0, %s246
      %s249 = sphi 0, %s248
      %s263 = sphi 0, %s249
      %s267 = sphi 0, %s267
      %s269 = sphi 0, %s267
      %s270 = sphi 0, %s269
      %s284 = sphi 0, %s270
      %s292 = sphi 0, %s294
      %s295 = sphi 0, %s292
      %s296 = sphi 0, %s295
      %s312 = sphi 0, %s296
    $region4: #{mha_pallas.1} parent=1 // loop_header_branch
      %23 = sbr.rel (%p21) target = $region8
    $region5: #{mha_pallas.1} parent=1 // loop_body
      %s25 = ssub.s32 %s20, 1
      %s26 = ssub.s32 %s20, 2
      %s33 = sadd.s32 1, %s28
      %p34 = scmp.ge.s32.totalorder %s33, 2
      %s35 = scalar_select %p34, 0, %s33
      %s36 = sadd.s32 1, %s27
      %s37 = scalar_select %p34, %s36, %s27
      %p38 = scmp.ge.s32.totalorder %s37, 2
      %s39 = scalar_select %p38, 0, %s37
      %s40 = ssub.s32 %s27, %s39
      %s41 = ssub.s32 %s28, %s35
      %s42 = sor.u32 %s40, %s41
      %p43 = scmp.eq.s32.totalorder %s42, 0
      %s45 = sadd.s32 %s44, 1
      %s46 = scalar_select %p43, %s44, %s45
      %p49 = pneg %p43
      %p50 = scmp.eq.s32.totalorder %s20, 3
      %p51 = por %p49, %p50
      %p52 = scmp.ne.s32.totalorder %s44, %s47
      %p53 = scmp.eq.s32.totalorder %s20, 0
      %p54 = por %p52, %p53
      %p55 = scmp.ne.s32.totalorder %s44, %s47
      %p56 = scmp.eq.s32.totalorder %s25, 3
      %p57 = por %p55, %p56
      %p58 = scmp.ne.s32.totalorder %s47, %s48
      %p59 = scmp.eq.s32.totalorder %s25, 0
      %p60 = por %p58, %p59
      %p61 = scmp.ne.s32.totalorder %s47, %s48
      %p62 = scmp.eq.s32.totalorder %s26, 3
      %p63 = por %p61, %p62
      %p65 = scmp.ne.s32.totalorder %s48, %s64
      %p66 = scmp.eq.s32.totalorder %s26, 0
      %p67 = por %p65, %p66
      %s68 = ssub.s32 %s27, %s39
      %p69 = scmp.eq.s32.totalorder %s68, 0
      %s71 = sadd.s32 %s70, 1
      %s72 = scalar_select %p69, %s70, %s71
      %p75 = pneg %p69
      %p76 = scmp.eq.s32.totalorder %s20, 3
      %p77 = por %p75, %p76
      %p78 = scmp.ne.s32.totalorder %s70, %s73
      %p79 = scmp.eq.s32.totalorder %s20, 0
      %p80 = por %p78, %p79
      %p81 = scmp.ne.s32.totalorder %s70, %s73
      %p82 = scmp.eq.s32.totalorder %s25, 3
      %p83 = por %p81, %p82
      %p84 = scmp.ne.s32.totalorder %s73, %s74
      %p85 = scmp.eq.s32.totalorder %s25, 0
      %p86 = por %p84, %p85
      %p87 = scmp.ne.s32.totalorder %s73, %s74
      %p88 = scmp.eq.s32.totalorder %s26, 3
      %p89 = por %p87, %p88
      %p91 = scmp.ne.s32.totalorder %s74, %s90
      %p92 = scmp.eq.s32.totalorder %s26, 0
      %p93 = por %p91, %p92
      %s94 = ssub.s32 %s27, %s39
      %p95 = scmp.eq.s32.totalorder %s94, 0
      %s97 = sadd.s32 %s96, 1
      %s98 = scalar_select %p95, %s96, %s97
      %p101 = pneg %p95
      %p102 = scmp.eq.s32.totalorder %s20, 3
      %p103 = por %p101, %p102
      %p104 = scmp.ne.s32.totalorder %s96, %s99
      %p105 = scmp.eq.s32.totalorder %s20, 0
      %p106 = por %p104, %p105
      %p107 = scmp.ne.s32.totalorder %s96, %s99
      %p108 = scmp.eq.s32.totalorder %s25, 3
      %p109 = por %p107, %p108
      %p110 = scmp.ne.s32.totalorder %s99, %s100
      %p111 = scmp.eq.s32.totalorder %s25, 0
      %p112 = por %p110, %p111
      %p113 = scmp.ne.s32.totalorder %s99, %s100
      %p114 = scmp.eq.s32.totalorder %s26, 3
      %p115 = por %p113, %p114
      %p117 = scmp.ne.s32.totalorder %s100, %s116
      %p118 = scmp.eq.s32.totalorder %s26, 0
      %p119 = por %p117, %p118
      %s121 = sadd.s32 %s120, 1
      %p124 = scmp.eq.s32.totalorder %s20, 3
      %p125 = scmp.ne.s32.totalorder %s120, %s122
      %p126 = scmp.eq.s32.totalorder %s20, 0
      %p127 = por %p125, %p126
      %p128 = scmp.ne.s32.totalorder %s120, %s122
      %p129 = scmp.eq.s32.totalorder %s25, 3
      %p130 = por %p128, %p129
      %p131 = scmp.ne.s32.totalorder %s122, %s123
      %p132 = scmp.eq.s32.totalorder %s25, 0
      %p133 = por %p131, %p132
      %p134 = scmp.ne.s32.totalorder %s122, %s123
      %p135 = scmp.eq.s32.totalorder %s26, 3
      %p136 = por %p134, %p135
      %p138 = scmp.ne.s32.totalorder %s123, %s137
      %p139 = scmp.eq.s32.totalorder %s26, 0
      %p140 = por %p138, %p139
      %s142 = sadd.s32 %s141, 1
      %p145 = scmp.eq.s32.totalorder %s20, 3
      %p146 = scmp.ne.s32.totalorder %s141, %s143
      %p147 = scmp.eq.s32.totalorder %s20, 0
      %p148 = por %p146, %p147
      %p149 = scmp.ne.s32.totalorder %s141, %s143
      %p150 = scmp.eq.s32.totalorder %s25, 3
      %p151 = por %p149, %p150
      %p152 = scmp.ne.s32.totalorder %s143, %s144
      %p153 = scmp.eq.s32.totalorder %s25, 0
      %p154 = por %p152, %p153
      %p155 = scmp.ne.s32.totalorder %s143, %s144
      %p156 = scmp.eq.s32.totalorder %s26, 3
      %p157 = por %p155, %p156
      %p159 = scmp.ne.s32.totalorder %s144, %s158
      %p160 = scmp.eq.s32.totalorder %s26, 0
      %p161 = por %p159, %p160
      %s163 = sadd.s32 %s162, 1
      %p166 = scmp.eq.s32.totalorder %s20, 3
      %p167 = scmp.ne.s32.totalorder %s162, %s164
      %p168 = scmp.eq.s32.totalorder %s20, 0
      %p169 = por %p167, %p168
      %p170 = scmp.ne.s32.totalorder %s162, %s164
      %p171 = scmp.eq.s32.totalorder %s25, 3
      %p172 = por %p170, %p171
      %p173 = scmp.ne.s32.totalorder %s164, %s165
      %p174 = scmp.eq.s32.totalorder %s25, 0
      %p175 = por %p173, %p174
      %p176 = scmp.ne.s32.totalorder %s164, %s165
      %p177 = scmp.eq.s32.totalorder %s26, 3
      %p178 = por %p176, %p177
      %p180 = scmp.ne.s32.totalorder %s165, %s179
      %p181 = scmp.eq.s32.totalorder %s26, 0
      %p182 = por %p180, %p181
      %s184 = sadd.s32 %s183, 1
      %p187 = scmp.eq.s32.totalorder %s20, 3
      %p188 = scmp.ne.s32.totalorder %s183, %s185
      %p189 = scmp.eq.s32.totalorder %s20, 0
      %p190 = por %p188, %p189
      %p191 = scmp.ne.s32.totalorder %s183, %s185
      %p192 = scmp.eq.s32.totalorder %s25, 3
      %p193 = por %p191, %p192
      %p194 = scmp.ne.s32.totalorder %s185, %s186
      %p195 = scmp.eq.s32.totalorder %s25, 0
      %p196 = por %p194, %p195
      %p197 = scmp.ne.s32.totalorder %s185, %s186
      %p198 = scmp.eq.s32.totalorder %s26, 3
      %p199 = por %p197, %p198
      %p201 = scmp.ne.s32.totalorder %s186, %s200
      %p202 = scmp.eq.s32.totalorder %s26, 0
      %p203 = por %p201, %p202
      %s205 = sadd.s32 %s204, 1
      %p208 = scmp.eq.s32.totalorder %s20, 3
      %p209 = scmp.ne.s32.totalorder %s204, %s206
      %p210 = scmp.eq.s32.totalorder %s20, 0
      %p211 = por %p209, %p210
      %p212 = scmp.ne.s32.totalorder %s204, %s206
      %p213 = scmp.eq.s32.totalorder %s25, 3
      %p214 = por %p212, %p213
      %p215 = scmp.ne.s32.totalorder %s206, %s207
      %p216 = scmp.eq.s32.totalorder %s25, 0
      %p217 = por %p215, %p216
      %p218 = scmp.ne.s32.totalorder %s206, %s207
      %p219 = scmp.eq.s32.totalorder %s26, 3
      %p220 = por %p218, %p219
      %p222 = scmp.ne.s32.totalorder %s207, %s221
      %p223 = scmp.eq.s32.totalorder %s26, 0
      %p224 = por %p222, %p223
      %s226 = sadd.s32 %s225, 1
      %p229 = scmp.eq.s32.totalorder %s20, 3
      %p230 = scmp.ne.s32.totalorder %s225, %s227
      %p231 = scmp.eq.s32.totalorder %s20, 0
      %p232 = por %p230, %p231
      %p233 = scmp.ne.s32.totalorder %s225, %s227
      %p234 = scmp.eq.s32.totalorder %s25, 3
      %p235 = por %p233, %p234
      %p236 = scmp.ne.s32.totalorder %s227, %s228
      %p237 = scmp.eq.s32.totalorder %s25, 0
      %p238 = por %p236, %p237
      %p239 = scmp.ne.s32.totalorder %s227, %s228
      %p240 = scmp.eq.s32.totalorder %s26, 3
      %p241 = por %p239, %p240
      %p243 = scmp.ne.s32.totalorder %s228, %s242
      %p244 = scmp.eq.s32.totalorder %s26, 0
      %p245 = por %p243, %p244
      %s247 = sadd.s32 %s246, 1
      %p250 = scmp.eq.s32.totalorder %s20, 3
      %p251 = scmp.ne.s32.totalorder %s246, %s248
      %p252 = scmp.eq.s32.totalorder %s20, 0
      %p253 = por %p251, %p252
      %p254 = scmp.ne.s32.totalorder %s246, %s248
      %p255 = scmp.eq.s32.totalorder %s25, 3
      %p256 = por %p254, %p255
      %p257 = scmp.ne.s32.totalorder %s248, %s249
      %p258 = scmp.eq.s32.totalorder %s25, 0
      %p259 = por %p257, %p258
      %p260 = scmp.ne.s32.totalorder %s248, %s249
      %p261 = scmp.eq.s32.totalorder %s26, 3
      %p262 = por %p260, %p261
      %p264 = scmp.ne.s32.totalorder %s249, %s263
      %p265 = scmp.eq.s32.totalorder %s26, 0
      %p266 = por %p264, %p265
      %s268 = sadd.s32 %s267, 1
      %p271 = scmp.eq.s32.totalorder %s20, 3
      %p272 = scmp.ne.s32.totalorder %s267, %s269
      %p273 = scmp.eq.s32.totalorder %s20, 0
      %p274 = por %p272, %p273
      %p275 = scmp.ne.s32.totalorder %s267, %s269
      %p276 = scmp.eq.s32.totalorder %s25, 3
      %p277 = por %p275, %p276
      %p278 = scmp.ne.s32.totalorder %s269, %s270
      %p279 = scmp.eq.s32.totalorder %s25, 0
      %p280 = por %p278, %p279
      %p281 = scmp.ne.s32.totalorder %s269, %s270
      %p282 = scmp.eq.s32.totalorder %s26, 3
      %p283 = por %p281, %p282
      %p285 = scmp.ne.s32.totalorder %s270, %s284
      %p286 = scmp.eq.s32.totalorder %s26, 0
      %p287 = por %p285, %p286
      %s288 = ssub.s32 %s27, %s39
      %s289 = ssub.s32 %s28, %s35
      %s290 = sor.u32 %s288, %s289
      %p291 = scmp.eq.s32.totalorder %s290, 0
      %s293 = sadd.s32 %s292, 1
      %s294 = scalar_select %p291, %s292, %s293
      %p297 = pneg %p291
      %p298 = scmp.eq.s32.totalorder %s20, 3
      %p299 = por %p297, %p298
      %p300 = scmp.ne.s32.totalorder %s292, %s295
      %p301 = scmp.eq.s32.totalorder %s20, 0
      %p302 = por %p300, %p301
      %p303 = scmp.ne.s32.totalorder %s292, %s295
      %p304 = scmp.eq.s32.totalorder %s25, 3
      %p305 = por %p303, %p304
      %p306 = scmp.ne.s32.totalorder %s295, %s296
      %p307 = scmp.eq.s32.totalorder %s25, 0
      %p308 = por %p306, %p307
      %p309 = scmp.ne.s32.totalorder %s295, %s296
      %p310 = scmp.eq.s32.totalorder %s26, 3
      %p311 = por %p309, %p310
      %p313 = scmp.ne.s32.totalorder %s296, %s312
      %p314 = scmp.eq.s32.totalorder %s26, 0
      %p315 = por %p313, %p314
      %p316 = scmp.le.s32.totalorder 1, %s20
      %p317 = scmp.lt.s32.totalorder %s20, 5
      %p318 = pnand %p316, %p317
      %p319 = pneg %p318
      // Predicated region
      $region9: #{mha_pallas.1} parent=5 // pred_check
        _
      $region10: #{mha_pallas.1} parent=5 // pred_check_branch
        %321 = sbr.rel (%p318) target = $region12
      $region11: #{mha_pallas.1} parent=5 // pred_region
        %s322 = ssub.s32 %s20, 1
        // Predicated region
        $region13: #{mha_pallas.1} parent=11 // pred_check
          %p323 = pneg %p133
        $region14: #{mha_pallas.1} parent=11 // pred_check_branch
          %325 = sbr.rel (%p323) target = $region16
        $region15: #{mha_pallas.1} parent=11 // pred_region
          _
        $region16: #{mha_pallas.1} parent=11 // pred_fallthru
          _
        // Predicated region
        $region17: #{mha_pallas.1} parent=11 // pred_check
          %p326 = pneg %p154
        $region18: #{mha_pallas.1} parent=11 // pred_check_branch
          %328 = sbr.rel (%p326) target = $region20
        $region19: #{mha_pallas.1} parent=11 // pred_region
          _
        $region20: #{mha_pallas.1} parent=11 // pred_fallthru
          _
        // Predicated region
        $region21: #{mha_pallas.1} parent=11 // pred_check
          %p329 = pneg %p175
        $region22: #{mha_pallas.1} parent=11 // pred_check_branch
          %331 = sbr.rel (%p329) target = $region24
        $region23: #{mha_pallas.1} parent=11 // pred_region
          _
        $region24: #{mha_pallas.1} parent=11 // pred_fallthru
          _
        // Predicated region
        $region25: #{mha_pallas.1} parent=11 // pred_check
          %p332 = pneg %p196
        $region26: #{mha_pallas.1} parent=11 // pred_check_branch
          %334 = sbr.rel (%p332) target = $region28
        $region27: #{mha_pallas.1} parent=11 // pred_region
          _
        $region28: #{mha_pallas.1} parent=11 // pred_fallthru
          _
        // Predicated region
        $region29: #{mha_pallas.1} parent=11 // pred_check
          %p335 = pneg %p217
        $region30: #{mha_pallas.1} parent=11 // pred_check_branch
          %337 = sbr.rel (%p335) target = $region32
        $region31: #{mha_pallas.1} parent=11 // pred_region
          _
        $region32: #{mha_pallas.1} parent=11 // pred_fallthru
          _
        // Predicated region
        $region33: #{mha_pallas.1} parent=11 // pred_check
          %p338 = pneg %p238
        $region34: #{mha_pallas.1} parent=11 // pred_check_branch
          %340 = sbr.rel (%p338) target = $region36
        $region35: #{mha_pallas.1} parent=11 // pred_region
          _
        $region36: #{mha_pallas.1} parent=11 // pred_fallthru
          _
        // Predicated region
        $region37: #{mha_pallas.1} parent=11 // pred_check
          %p341 = pneg %p259
        $region38: #{mha_pallas.1} parent=11 // pred_check_branch
          %343 = sbr.rel (%p341) target = $region40
        $region39: #{mha_pallas.1} parent=11 // pred_region
          _
        $region40: #{mha_pallas.1} parent=11 // pred_fallthru
          _
        // Predicated region
        $region41: #{mha_pallas.1} parent=11 // pred_check
          %p344 = pneg %p280
        $region42: #{mha_pallas.1} parent=11 // pred_check_branch
          %346 = sbr.rel (%p344) target = $region44
        $region43: #{mha_pallas.1} parent=11 // pred_region
          _
        $region44: #{mha_pallas.1} parent=11 // pred_fallthru
          _
      $region12: #{mha_pallas.1} parent=5 // pred_fallthru
        _
      %p347 = scmp.lt.s32.totalorder %s20, 4
      // Predicated region
      $region45: #{mha_pallas.1} parent=5 // pred_check
        %p348 = pneg %p347
      $region46: #{mha_pallas.1} parent=5 // pred_check_branch
        %350 = sbr.rel (%p348) target = $region48
      $region47: #{mha_pallas.1} parent=5 // pred_region
        // Predicated region
        $region49: #{mha_pallas.1} parent=47 // pred_check
          %p351 = pneg %p54
        $region50: #{mha_pallas.1} parent=47 // pred_check_branch
          %353 = sbr.rel (%p351) target = $region52
        $region51: #{mha_pallas.1} parent=47 // pred_region
          %p354 = scmp.lt.s32.totalorder %s27, 1
          %s355 = scalar_select %p354, %s27, 1
          %p356 = scmp.lt.s32.totalorder %s28, 1
          %s357 = scalar_select %p356, %s28, 1
          %s358 = smul.addr %s355, 2
          %s359 = sadd.s32 %s357, %s358
          %s360 = smul.addr %s359, 4
          %s361 = scalar_lea.vmem %s0, %s360
        $region52: #{mha_pallas.1} parent=47 // pred_fallthru
          _
        // Predicated region
        $region53: #{mha_pallas.1} parent=47 // pred_check
          %p362 = pneg %p80
        $region54: #{mha_pallas.1} parent=47 // pred_check_branch
          %364 = sbr.rel (%p362) target = $region56
        $region55: #{mha_pallas.1} parent=47 // pred_region
          %p365 = scmp.lt.s32.totalorder %s27, 1
          %s366 = scalar_select %p365, %s27, 1
          %s367 = smul.addr %s366, 2
          %s368 = smul.addr %s367, 4
          %s369 = scalar_lea.vmem %s1, %s368
        $region56: #{mha_pallas.1} parent=47 // pred_fallthru
          _
        // Predicated region
        $region57: #{mha_pallas.1} parent=47 // pred_check
          %p370 = pneg %p106
        $region58: #{mha_pallas.1} parent=47 // pred_check_branch
          %372 = sbr.rel (%p370) target = $region60
        $region59: #{mha_pallas.1} parent=47 // pred_region
          %p373 = scmp.lt.s32.totalorder %s27, 1
          %s374 = scalar_select %p373, %s27, 1
          %s375 = smul.addr %s374, 2
          %s376 = smul.addr %s375, 4
          %s377 = scalar_lea.vmem %s2, %s376
        $region60: #{mha_pallas.1} parent=47 // pred_fallthru
          _
      $region48: #{mha_pallas.1} parent=5 // pred_fallthru
        _
      %p378 = scmp.le.s32.totalorder 1, %s20
      %p379 = scmp.lt.s32.totalorder %s20, 5
      %p380 = pnand %p378, %p379
      %p381 = pneg %p380
      // Predicated region
      $region61: #{mha_pallas.1} parent=5 // pred_check
        _
      $region62: #{mha_pallas.1} parent=5 // pred_check_branch
        %383 = sbr.rel (%p380) target = $region64
      $region63: #{mha_pallas.1} parent=5 // pred_region
        %s384 = ssub.s32 %s20, 1
        %p385 = scmp.lt.s32.totalorder %s29, 1
        %s386 = scalar_select %p385, %s29, 1
        %p387 = scmp.lt.s32.totalorder %s30, 1
        %s388 = scalar_select %p387, %s30, 1
        %s389 = smul.addr %s386, 2
        %s390 = sadd.s32 %s388, %s389
        %s391 = smul.addr %s390, 4
        %s392 = scalar_lea.vmem %s0, %s391
        %p393 = pneg %p60
        %p394 = pneg %p57
        %p395 = scmp.lt.s32.totalorder %s29, 1
        %s396 = scalar_select %p395, %s29, 1
        %s397 = smul.addr %s396, 2
        %s398 = smul.addr %s397, 4
        %s399 = scalar_lea.vmem %s1, %s398
        %p400 = pneg %p86
        %p401 = pneg %p83
        %p402 = scmp.lt.s32.totalorder %s29, 1
        %s403 = scalar_select %p402, %s29, 1
        %s404 = smul.addr %s403, 2
        %s405 = smul.addr %s404, 4
        %s406 = scalar_lea.vmem %s2, %s405
        %p407 = pneg %p112
        %p408 = pneg %p109
        %p409 = pneg %p133
        %p410 = pneg %p130
        %p411 = pneg %p154
        %p412 = pneg %p151
        %p413 = pneg %p175
        %p414 = pneg %p172
        %p415 = pneg %p196
        %p416 = pneg %p193
        %p417 = pneg %p217
        %p418 = pneg %p214
        %p419 = pneg %p238
        %p420 = pneg %p235
        %p421 = pneg %p259
        %p422 = pneg %p256
        %p423 = pneg %p280
        %p424 = pneg %p277
        %p425 = pneg %p308
        %p426 = pneg %p305
        %s427 = sand.u32 %s295, 1
        %s428 = scalar_lea.sflag [#allocation5], %s427
        %s429 = sand.u32 %s295, 1
        %s430 = smul.addr %s429, 8
        %s431 = scalar_lea.vmem [#allocation4], %s430
        %p432 = scmp.lt.s32.totalorder %s29, 1
        %s433 = scalar_select %p432, %s29, 1
        %p434 = scmp.lt.s32.totalorder %s30, 1
        %s435 = scalar_select %p434, %s30, 1
        %s436 = smul.addr %s433, 2
        %s437 = sadd.s32 %s435, %s436
        %s438 = smul.addr %s437, 4
        %s439 = scalar_lea.vmem %s0, %s438
        %p440 = scmp.lt.s32.totalorder %s29, 1
        %s441 = scalar_select %p440, %s29, 1
        %s442 = smul.addr %s441, 2
        %s443 = smul.addr %s442, 4
        %s444 = scalar_lea.vmem %s1, %s443
        %p445 = scmp.lt.s32.totalorder %s29, 1
        %s446 = scalar_select %p445, %s29, 1
        %s447 = smul.addr %s446, 2
        %s448 = smul.addr %s447, 4
        %s449 = scalar_lea.vmem %s2, %s448
        %p451 = scmp.eq.s32.totalorder %s30, 0
        // Predicated region
        $region65: #{mha_pallas.1} parent=63 // pred_check
          %p452 = pneg %p451
        $region66: #{mha_pallas.1} parent=63 // pred_check_branch
          %454 = sbr.rel (%p452) target = $region68
        $region67: #{mha_pallas.1} parent=63 // pred_region
          %v455 = vld [vmem:[%s444] sm:$0xf]
          %v456 = vld [vmem:[%s444 + $0x4] sm:$0xf]
          %v457 = vld [vmem:[%s5] sm:$0xf]
          %v458 = vld [vmem:[%s5 + $0x4] sm:$0xf]
          %v459 = vld [vmem:[%s5 + $0x8] sm:$0xf]
          %v460 = vld [vmem:[%s5 + $0xc] sm:$0xf]
          %v461 = vld [vmem:[%s6] sm:$0x1]
          %v463 = vlaneseq
          %v464 = vshrl.u32 %v463, 7
          %v465 = vsub.s32 0, %v464
          %v466 = vrot.slane %v461, %v465
          %v470 = vunpack.c.l.b16 %v455
          %v471 = vunpack.c.l.b16 %v456
          %v472 = vpack.c.b16 %v471, %v470
          %v477 = vunpack.c.l.b16 %v457
          %v478 = vunpack.c.l.b16 %v458
          %v479 = vunpack.c.l.b16 %v459
          %v480 = vunpack.c.l.b16 %v460
          %v481 = vpack.c.b16 %v478, %v477
          %v482 = vpack.c.b16 %v480, %v479
          %vm485 = vcmask 261120
          %v487 = vsel %vm485, %v472, 0
          %489 = vmatprep.subr.bf16.mxu0 0
          %490 = vmatpush1.bf16.msra.mxu0 0
          %491 = vmatprep.subr.bf16.mxu0 0
          %492 = vmatpush1.bf16.msra.mxu0 0
          %493 = vmatprep.subr.bf16.mxu0 0
          %494 = vmatpush1.bf16.msra.mxu0 0
          %495 = vmatprep.subr.bf16.mxu0 0
          %496 = vmatpush1.bf16.msra.mxu0 0
          %497 = vmatprep.subr.bf16.mxu0 0
          %498 = vmatpush1.bf16.msra.mxu0 0
          %499 = vmatprep.subr.bf16.mxu0 0
          %500 = vmatpush1.bf16.msra.mxu0 0
          %501 = vmatprep.subr.bf16.mxu0 0
          %502 = vmatpush1.bf16.msra.mxu0 %v482
          %503 = vmatprep.subr.bf16.mxu0 0
          %504 = vmatpush1.bf16.msra.mxu0 %v481
          %505 = vmatprep.subr.bf16.mxu0 0
          %506 = vmatpush2.bf16.msra.mxu0 0
          %507 = vmatprep.subr.bf16.mxu0 0
          %508 = vmatpush2.bf16.msra.mxu0 0
          %509 = vmatprep.subr.bf16.mxu0 0
          %510 = vmatpush2.bf16.msra.mxu0 0
          %511 = vmatprep.subr.bf16.mxu0 0
          %512 = vmatpush2.bf16.msra.mxu0 0
          %513 = vmatprep.subr.bf16.mxu0 0
          %514 = vmatpush2.bf16.msra.mxu0 0
          %515 = vmatprep.subr.bf16.mxu0 0
          %516 = vmatpush2.bf16.msra.mxu0 0
          %517 = vmatprep.subr.bf16.mxu0 0
          %518 = vmatpush2.bf16.msra.mxu0 0
          %519 = vmatprep.subr.bf16.mxu0 0
          %520 = vmatpush2.bf16.msra.mxu0 0
          %521 = vmatprep.mubr.bf16.mxu0 0
          %522 = vmatmul.mubr.bf16.gmra.mxu0 %v487
          %v523 = vpop.f32.mrf.mxu0
          %v524 = vadd.f32 %v466, %v523
          %v525 = vpop.f32.mrf.mxu0
          %v526 = vpop.f32.mrf.mxu0
          %v527 = vadd.f32 %v466, %v526
          %v528 = vpop.f32.mrf.mxu0
          %529 = vdwg.mxu0
          %v530 = vpack.c.bf16 %v527, %v524
          %v532 = vunpack.c.l.b16 %v530
          %v533 = vunpack.c.h.b16 %v530
          %v534 = vpack.c.b16 %v532, %v532
          %v535 = vpack.c.b16 %v533, %v533
          %vm538 = vcmask 257024
          %539 = vst.msk [vmem:[#allocation2] sm:$0xf] %vm538, %v534
          %540 = vst.msk [vmem:[#allocation2 + $0x4] sm:$0xf] %vm538, %v535
          %v541 = vld [vmem:[%s449] sm:$0xf]
          %v542 = vld [vmem:[%s449 + $0x4] sm:$0xf]
          %v543 = vld [vmem:[%s7] sm:$0xf]
          %v544 = vld [vmem:[%s7 + $0x4] sm:$0xf]
          %v545 = vld [vmem:[%s7 + $0x8] sm:$0xf]
          %v546 = vld [vmem:[%s7 + $0xc] sm:$0xf]
          %v547 = vld [vmem:[%s8] sm:$0x1]
          %v549 = vlaneseq
          %v550 = vshrl.u32 %v549, 7
          %v551 = vsub.s32 0, %v550
          %v552 = vrot.slane %v547, %v551
          %v556 = vunpack.c.l.b16 %v541
          %v557 = vunpack.c.l.b16 %v542
          %v558 = vpack.c.b16 %v557, %v556
          %v563 = vunpack.c.l.b16 %v543
          %v564 = vunpack.c.l.b16 %v544
          %v565 = vunpack.c.l.b16 %v545
          %v566 = vunpack.c.l.b16 %v546
          %v567 = vpack.c.b16 %v564, %v563
          %v568 = vpack.c.b16 %v566, %v565
          %v572 = vsel %vm485, %v558, 0
          %574 = vmatprep.subr.bf16.mxu0 0
          %575 = vmatpush1.bf16.msra.mxu0 0
          %576 = vmatprep.subr.bf16.mxu0 0
          %577 = vmatpush1.bf16.msra.mxu0 0
          %578 = vmatprep.subr.bf16.mxu0 0
          %579 = vmatpush1.bf16.msra.mxu0 0
          %580 = vmatprep.subr.bf16.mxu0 0
          %581 = vmatpush1.bf16.msra.mxu0 0
          %582 = vmatprep.subr.bf16.mxu0 0
          %583 = vmatpush1.bf16.msra.mxu0 0
          %584 = vmatprep.subr.bf16.mxu0 0
          %585 = vmatpush1.bf16.msra.mxu0 0
          %586 = vmatprep.subr.bf16.mxu0 0
          %587 = vmatpush1.bf16.msra.mxu0 %v568
          %588 = vmatprep.subr.bf16.mxu0 0
          %589 = vmatpush1.bf16.msra.mxu0 %v567
          %590 = vmatprep.subr.bf16.mxu0 0
          %591 = vmatpush2.bf16.msra.mxu0 0
          %592 = vmatprep.subr.bf16.mxu0 0
          %593 = vmatpush2.bf16.msra.mxu0 0
          %594 = vmatprep.subr.bf16.mxu0 0
          %595 = vmatpush2.bf16.msra.mxu0 0
          %596 = vmatprep.subr.bf16.mxu0 0
          %597 = vmatpush2.bf16.msra.mxu0 0
          %598 = vmatprep.subr.bf16.mxu0 0
          %599 = vmatpush2.bf16.msra.mxu0 0
          %600 = vmatprep.subr.bf16.mxu0 0
          %601 = vmatpush2.bf16.msra.mxu0 0
          %602 = vmatprep.subr.bf16.mxu0 0
          %603 = vmatpush2.bf16.msra.mxu0 0
          %604 = vmatprep.subr.bf16.mxu0 0
          %605 = vmatpush2.bf16.msra.mxu0 0
          %606 = vmatprep.mubr.bf16.mxu0 0
          %607 = vmatmul.mubr.bf16.gmra.mxu0 %v572
          %v608 = vpop.f32.mrf.mxu0
          %v609 = vadd.f32 %v552, %v608
          %v610 = vpop.f32.mrf.mxu0
          %v611 = vpop.f32.mrf.mxu0
          %v612 = vadd.f32 %v552, %v611
          %v613 = vpop.f32.mrf.mxu0
          %614 = vdwg.mxu0
          %v615 = vpack.c.bf16 %v612, %v609
          %v617 = vunpack.c.l.b16 %v615
          %v618 = vunpack.c.h.b16 %v615
          %v619 = vpack.c.b16 %v617, %v617
          %v620 = vpack.c.b16 %v618, %v618
          %623 = vst.msk [vmem:[#allocation3] sm:$0xf] %vm538, %v619
          %624 = vst.msk [vmem:[#allocation3 + $0x4] sm:$0xf] %vm538, %v620
        $region68: #{mha_pallas.1} parent=63 // pred_fallthru
          _
        %v625 = vld [vmem:[%s439] sm:$0xf]
        %v626 = vld [vmem:[%s3] sm:$0xf]
        %v627 = vld [vmem:[%s3 + $0x4] sm:$0xf]
        %v628 = vld [vmem:[%s3 + $0x8] sm:$0xf]
        %v629 = vld [vmem:[%s3 + $0xc] sm:$0xf]
        %v630 = vld [vmem:[%s4] sm:$0x1]
        %v632 = vlaneseq
        %v633 = vshrl.u32 %v632, 7
        %v634 = vsub.s32 0, %v633
        %v635 = vrot.slane %v630, %v634
        %v641 = vunpack.c.l.b16 %v626
        %v642 = vunpack.c.l.b16 %v627
        %v643 = vunpack.c.l.b16 %v628
        %v644 = vunpack.c.l.b16 %v629
        %v645 = vpack.c.b16 %v642, %v641
        %v646 = vpack.c.b16 %v644, %v643
        %vm649 = vcmask 261120
        %v651 = vsel %vm649, %v625, 0
        %653 = vmatprep.subr.bf16.mxu0 0
        %654 = vmatpush1.bf16.msra.mxu0 0
        %655 = vmatprep.subr.bf16.mxu0 0
        %656 = vmatpush1.bf16.msra.mxu0 0
        %657 = vmatprep.subr.bf16.mxu0 0
        %658 = vmatpush1.bf16.msra.mxu0 0
        %659 = vmatprep.subr.bf16.mxu0 0
        %660 = vmatpush1.bf16.msra.mxu0 0
        %661 = vmatprep.subr.bf16.mxu0 0
        %662 = vmatpush1.bf16.msra.mxu0 0
        %663 = vmatprep.subr.bf16.mxu0 0
        %664 = vmatpush1.bf16.msra.mxu0 0
        %665 = vmatprep.subr.bf16.mxu0 0
        %666 = vmatpush1.bf16.msra.mxu0 %v646
        %667 = vmatprep.subr.bf16.mxu0 0
        %668 = vmatpush1.bf16.msra.mxu0 %v645
        %669 = vmatprep.subr.bf16.mxu0 0
        %670 = vmatpush2.bf16.msra.mxu0 0
        %671 = vmatprep.subr.bf16.mxu0 0
        %672 = vmatpush2.bf16.msra.mxu0 0
        %673 = vmatprep.subr.bf16.mxu0 0
        %674 = vmatpush2.bf16.msra.mxu0 0
        %675 = vmatprep.subr.bf16.mxu0 0
        %676 = vmatpush2.bf16.msra.mxu0 0
        %677 = vmatprep.subr.bf16.mxu0 0
        %678 = vmatpush2.bf16.msra.mxu0 0
        %679 = vmatprep.subr.bf16.mxu0 0
        %680 = vmatpush2.bf16.msra.mxu0 0
        %681 = vmatprep.subr.bf16.mxu0 0
        %682 = vmatpush2.bf16.msra.mxu0 0
        %683 = vmatprep.subr.bf16.mxu0 0
        %684 = vmatpush2.bf16.msra.mxu0 0
        %685 = vmatprep.mubr.bf16.mxu0 0
        %686 = vmatmul.mubr.bf16.gmra.mxu0 %v651
        %v687 = vpop.f32.mrf.mxu0
        %v688 = vadd.f32 %v635, %v687
        %v689 = vpop.f32.mrf.mxu0
        %v690 = vpop.f32.mrf.mxu0
        %v691 = vpop.f32.mrf.mxu0
        %692 = vdwg.mxu0
        %v693 = vpack.c.bf16 %v688, %v688
        %v694 = vld [vmem:[#allocation2] sm:$0xf]
        %v695 = vld [vmem:[#allocation2 + $0x4] sm:$0xf]
        %v696 = vld [vmem:[#allocation3] sm:$0xf]
        %v697 = vld [vmem:[#allocation3 + $0x4] sm:$0xf]
        %v700 = vunpack.c.l.b16 %v694
        %v701 = vunpack.c.l.b16 %v695
        %v702 = vpack.c.b16 %v701, %v700
        %vm703 = vcmask 64512
        %v705 = vsel %vm703, %v693, 0
        %v708 = vsel %vm703, %v702, 0
        %710 = vmatprep.subr.bf16.mxu0 0
        %711 = vmatpush1.bf16.xpose.msra.mxu0 0
        %712 = vmatprep.subr.bf16.mxu0 0
        %713 = vmatpush1.bf16.xpose.msra.mxu0 0
        %714 = vmatprep.subr.bf16.mxu0 0
        %715 = vmatpush1.bf16.xpose.msra.mxu0 0
        %716 = vmatprep.subr.bf16.mxu0 0
        %717 = vmatpush1.bf16.xpose.msra.mxu0 0
        %718 = vmatprep.subr.bf16.mxu0 0
        %719 = vmatpush1.bf16.xpose.msra.mxu0 0
        %720 = vmatprep.subr.bf16.mxu0 0
        %721 = vmatpush1.bf16.xpose.msra.mxu0 0
        %722 = vmatprep.subr.bf16.mxu0 0
        %723 = vmatpush1.bf16.xpose.msra.mxu0 0
        %724 = vmatprep.subr.bf16.mxu0 0
        %725 = vmatpush1.bf16.xpose.msra.mxu0 %v708
        %726 = vmatprep.subr.bf16.mxu0 0
        %727 = vmatpush2.bf16.xpose.msra.mxu0 0
        %728 = vmatprep.subr.bf16.mxu0 0
        %729 = vmatpush2.bf16.xpose.msra.mxu0 0
        %730 = vmatprep.subr.bf16.mxu0 0
        %731 = vmatpush2.bf16.xpose.msra.mxu0 0
        %732 = vmatprep.subr.bf16.mxu0 0
        %733 = vmatpush2.bf16.xpose.msra.mxu0 0
        %734 = vmatprep.subr.bf16.mxu0 0
        %735 = vmatpush2.bf16.xpose.msra.mxu0 0
        %736 = vmatprep.subr.bf16.mxu0 0
        %737 = vmatpush2.bf16.xpose.msra.mxu0 0
        %738 = vmatprep.subr.bf16.mxu0 0
        %739 = vmatpush2.bf16.xpose.msra.mxu0 0
        %740 = vmatprep.subr.bf16.mxu0 0
        %741 = vmatpush2.bf16.xpose.msra.mxu0 0
        %742 = vmatprep.mubr.bf16.mxu0 0
        %743 = vmatmul.mubr.bf16.gmra.mxu0 %v705
        %v744 = vpop.f32.mrf.mxu0
        %v745 = vadd.f32 0.0, %v744
        %v746 = vpop.f32.mrf.mxu0
        %v747 = vpop.f32.mrf.mxu0
        %v748 = vpop.f32.mrf.mxu0
        %749 = vdwg.mxu0
        %vm750 = vcmask 130048
        %v751 = vsel %vm750, %v745, -inf
        %752 = vmax.xlane.f32.xlu0 %v751
        %v753 = vpop.xlane.xlu0 %752
        %v754 = vsub.f32 %v745, %v753
        %v755 = vmul.f32 %v754, 1.442695
        %v756 = vpow.pop %v755
        %v757 = vsel %vm750, %v756, 0.0
        %758 = vadd.xlane.f32.xlu0 %v757
        %v759 = vpop.xlane.xlu0 %758
        %v760 = vpack.c.bf16 %v756, %v756
        %v763 = vunpack.c.l.b16 %v696
        %v764 = vunpack.c.l.b16 %v697
        %v765 = vpack.c.b16 %v764, %v763
        %v768 = vsel %vm750, %v760, 0
        %770 = vmatprep.subr.bf16.mxu0 0
        %771 = vmatpush1.bf16.msra.mxu0 0
        %772 = vmatprep.subr.bf16.mxu0 0
        %773 = vmatpush1.bf16.msra.mxu0 0
        %774 = vmatprep.subr.bf16.mxu0 0
        %775 = vmatpush1.bf16.msra.mxu0 0
        %776 = vmatprep.subr.bf16.mxu0 0
        %777 = vmatpush1.bf16.msra.mxu0 0
        %778 = vmatprep.subr.bf16.mxu0 0
        %779 = vmatpush1.bf16.msra.mxu0 0
        %780 = vmatprep.subr.bf16.mxu0 0
        %781 = vmatpush1.bf16.msra.mxu0 0
        %782 = vmatprep.subr.bf16.mxu0 0
        %783 = vmatpush1.bf16.msra.mxu0 0
        %784 = vmatprep.subr.bf16.mxu0 0
        %785 = vmatpush1.bf16.msra.mxu0 %v765
        %786 = vmatprep.subr.bf16.mxu0 0
        %787 = vmatpush2.bf16.msra.mxu0 0
        %788 = vmatprep.subr.bf16.mxu0 0
        %789 = vmatpush2.bf16.msra.mxu0 0
        %790 = vmatprep.subr.bf16.mxu0 0
        %791 = vmatpush2.bf16.msra.mxu0 0
        %792 = vmatprep.subr.bf16.mxu0 0
        %793 = vmatpush2.bf16.msra.mxu0 0
        %794 = vmatprep.subr.bf16.mxu0 0
        %795 = vmatpush2.bf16.msra.mxu0 0
        %796 = vmatprep.subr.bf16.mxu0 0
        %797 = vmatpush2.bf16.msra.mxu0 0
        %798 = vmatprep.subr.bf16.mxu0 0
        %799 = vmatpush2.bf16.msra.mxu0 0
        %800 = vmatprep.subr.bf16.mxu0 0
        %801 = vmatpush2.bf16.msra.mxu0 0
        %802 = vmatprep.mubr.bf16.mxu0 0
        %803 = vmatmul.mubr.bf16.gmra.mxu0 %v768
        %v804 = vpop.f32.mrf.mxu0
        %v805 = vadd.f32 0.0, %v804
        %v806 = vpop.f32.mrf.mxu0
        %v807 = vpop.f32.mrf.mxu0
        %v808 = vpop.f32.mrf.mxu0
        %809 = vdwg.mxu0
        %v810 = vrcp.pop %v759
        %v811 = vmul.f32 %v805, %v810
        %v812 = vld [vmem:[%s9] sm:$0xf]
        %v813 = vpack.c.bf16 %v811, %v811
        %815 = vrot.lane.b32.xlu0 %v693, 120
        %v816 = vpop.permute.xlu0 %815
        %817 = vrot.lane.b32.xlu0 %v702, 120
        %v818 = vpop.permute.xlu0 %817
        %v820 = vsel %vm703, %v816, 0
        %v823 = vsel %vm703, %v818, 0
        %825 = vmatprep.subr.bf16.mxu0 0
        %826 = vmatpush1.bf16.xpose.msra.mxu0 0
        %827 = vmatprep.subr.bf16.mxu0 0
        %828 = vmatpush1.bf16.xpose.msra.mxu0 0
        %829 = vmatprep.subr.bf16.mxu0 0
        %830 = vmatpush1.bf16.xpose.msra.mxu0 0
        %831 = vmatprep.subr.bf16.mxu0 0
        %832 = vmatpush1.bf16.xpose.msra.mxu0 0
        %833 = vmatprep.subr.bf16.mxu0 0
        %834 = vmatpush1.bf16.xpose.msra.mxu0 0
        %835 = vmatprep.subr.bf16.mxu0 0
        %836 = vmatpush1.bf16.xpose.msra.mxu0 0
        %837 = vmatprep.subr.bf16.mxu0 0
        %838 = vmatpush1.bf16.xpose.msra.mxu0 0
        %839 = vmatprep.subr.bf16.mxu0 0
        %840 = vmatpush1.bf16.xpose.msra.mxu0 %v823
        %841 = vmatprep.subr.bf16.mxu0 0
        %842 = vmatpush2.bf16.xpose.msra.mxu0 0
        %843 = vmatprep.subr.bf16.mxu0 0
        %844 = vmatpush2.bf16.xpose.msra.mxu0 0
        %845 = vmatprep.subr.bf16.mxu0 0
        %846 = vmatpush2.bf16.xpose.msra.mxu0 0
        %847 = vmatprep.subr.bf16.mxu0 0
        %848 = vmatpush2.bf16.xpose.msra.mxu0 0
        %849 = vmatprep.subr.bf16.mxu0 0
        %850 = vmatpush2.bf16.xpose.msra.mxu0 0
        %851 = vmatprep.subr.bf16.mxu0 0
        %852 = vmatpush2.bf16.xpose.msra.mxu0 0
        %853 = vmatprep.subr.bf16.mxu0 0
        %854 = vmatpush2.bf16.xpose.msra.mxu0 0
        %855 = vmatprep.subr.bf16.mxu0 0
        %856 = vmatpush2.bf16.xpose.msra.mxu0 0
        %857 = vmatprep.mubr.bf16.mxu0 0
        %858 = vmatmul.mubr.bf16.gmra.mxu0 %v820
        %v859 = vpop.f32.mrf.mxu0
        %v860 = vadd.f32 0.0, %v859
        %v861 = vpop.f32.mrf.mxu0
        %v862 = vpop.f32.mrf.mxu0
        %v863 = vpop.f32.mrf.mxu0
        %864 = vdwg.mxu0
        %v865 = vsel %vm750, %v860, -inf
        %866 = vmax.xlane.f32.xlu0 %v865
        %v867 = vpop.xlane.xlu0 %866
        %v868 = vsub.f32 %v860, %v867
        %v869 = vmul.f32 %v868, 1.442695
        %v870 = vpow.pop %v869
        %v871 = vsel %vm750, %v870, 0.0
        %872 = vadd.xlane.f32.xlu0 %v871
        %v873 = vpop.xlane.xlu0 %872
        %v874 = vpack.c.bf16 %v870, %v870
        %875 = vrot.lane.b32.xlu0 %v765, 120
        %v876 = vpop.permute.xlu0 %875
        %v879 = vsel %vm750, %v874, 0
        %881 = vmatprep.subr.bf16.mxu0 0
        %882 = vmatpush1.bf16.msra.mxu0 0
        %883 = vmatprep.subr.bf16.mxu0 0
        %884 = vmatpush1.bf16.msra.mxu0 0
        %885 = vmatprep.subr.bf16.mxu0 0
        %886 = vmatpush1.bf16.msra.mxu0 0
        %887 = vmatprep.subr.bf16.mxu0 0
        %888 = vmatpush1.bf16.msra.mxu0 0
        %889 = vmatprep.subr.bf16.mxu0 0
        %890 = vmatpush1.bf16.msra.mxu0 0
        %891 = vmatprep.subr.bf16.mxu0 0
        %892 = vmatpush1.bf16.msra.mxu0 0
        %893 = vmatprep.subr.bf16.mxu0 0
        %894 = vmatpush1.bf16.msra.mxu0 0
        %895 = vmatprep.subr.bf16.mxu0 0
        %896 = vmatpush1.bf16.msra.mxu0 %v876
        %897 = vmatprep.subr.bf16.mxu0 0
        %898 = vmatpush2.bf16.msra.mxu0 0
        %899 = vmatprep.subr.bf16.mxu0 0
        %900 = vmatpush2.bf16.msra.mxu0 0
        %901 = vmatprep.subr.bf16.mxu0 0
        %902 = vmatpush2.bf16.msra.mxu0 0
        %903 = vmatprep.subr.bf16.mxu0 0
        %904 = vmatpush2.bf16.msra.mxu0 0
        %905 = vmatprep.subr.bf16.mxu0 0
        %906 = vmatpush2.bf16.msra.mxu0 0
        %907 = vmatprep.subr.bf16.mxu0 0
        %908 = vmatpush2.bf16.msra.mxu0 0
        %909 = vmatprep.subr.bf16.mxu0 0
        %910 = vmatpush2.bf16.msra.mxu0 0
        %911 = vmatprep.subr.bf16.mxu0 0
        %912 = vmatpush2.bf16.msra.mxu0 0
        %913 = vmatprep.mubr.bf16.mxu0 0
        %914 = vmatmul.mubr.bf16.gmra.mxu0 %v879
        %v915 = vpop.f32.mrf.mxu0
        %v916 = vadd.f32 0.0, %v915
        %v917 = vpop.f32.mrf.mxu0
        %v918 = vpop.f32.mrf.mxu0
        %v919 = vpop.f32.mrf.mxu0
        %920 = vdwg.mxu0
        %v921 = vrcp.pop %v873
        %v922 = vmul.f32 %v916, %v921
        %v923 = vld [vmem:[%s9 + $0x4] sm:$0xf]
        %v924 = vpack.c.bf16 %v922, %v922
        %v926 = vsel %vm703, %v924, 0
        %vm928 = vcmask 1043456
        %v930 = vsel %vm928, %v923, 0
        %932 = vmatprep.subr.bf16.mxu0 0
        %933 = vmatpush1.bf16.msra.mxu0 0
        %934 = vmatprep.subr.bf16.mxu0 0
        %935 = vmatpush1.bf16.msra.mxu0 0
        %936 = vmatprep.subr.bf16.mxu0 0
        %937 = vmatpush1.bf16.msra.mxu0 0
        %938 = vmatprep.subr.bf16.mxu0 0
        %939 = vmatpush1.bf16.msra.mxu0 0
        %940 = vmatprep.subr.bf16.mxu0 0
        %941 = vmatpush1.bf16.msra.mxu0 0
        %942 = vmatprep.subr.bf16.mxu0 0
        %943 = vmatpush1.bf16.msra.mxu0 0
        %944 = vmatprep.subr.bf16.mxu0 0
        %945 = vmatpush1.bf16.msra.mxu0 0
        %946 = vmatprep.subr.bf16.mxu0 0
        %947 = vmatpush1.bf16.msra.mxu0 %v930
        %948 = vmatprep.subr.bf16.mxu0 0
        %949 = vmatpush2.bf16.msra.mxu0 0
        %950 = vmatprep.subr.bf16.mxu0 0
        %951 = vmatpush2.bf16.msra.mxu0 0
        %952 = vmatprep.subr.bf16.mxu0 0
        %953 = vmatpush2.bf16.msra.mxu0 0
        %954 = vmatprep.subr.bf16.mxu0 0
        %955 = vmatpush2.bf16.msra.mxu0 0
        %956 = vmatprep.subr.bf16.mxu0 0
        %957 = vmatpush2.bf16.msra.mxu0 0
        %958 = vmatprep.subr.bf16.mxu0 0
        %959 = vmatpush2.bf16.msra.mxu0 0
        %960 = vmatprep.subr.bf16.mxu0 0
        %961 = vmatpush2.bf16.msra.mxu0 0
        %962 = vmatprep.subr.bf16.mxu0 0
        %963 = vmatpush2.bf16.msra.mxu0 0
        %964 = vmatprep.mubr.bf16.mxu0 0
        %965 = vmatmul.mubr.bf16.gmra.mxu0 %v926
        %v966 = vpop.f32.mrf.mxu0
        %v967 = vadd.f32 0.0, %v966
        %v968 = vpop.f32.mrf.mxu0
        %v969 = vpop.f32.mrf.mxu0
        %v970 = vpop.f32.mrf.mxu0
        %971 = vdwg.mxu0
        %v973 = vsel %vm703, %v813, 0
        %v976 = vsel %vm928, %v812, 0
        %978 = vmatprep.subr.bf16.mxu0 0
        %979 = vmatpush1.bf16.msra.mxu0 0
        %980 = vmatprep.subr.bf16.mxu0 0
        %981 = vmatpush1.bf16.msra.mxu0 0
        %982 = vmatprep.subr.bf16.mxu0 0
        %983 = vmatpush1.bf16.msra.mxu0 0
        %984 = vmatprep.subr.bf16.mxu0 0
        %985 = vmatpush1.bf16.msra.mxu0 0
        %986 = vmatprep.subr.bf16.mxu0 0
        %987 = vmatpush1.bf16.msra.mxu0 0
        %988 = vmatprep.subr.bf16.mxu0 0
        %989 = vmatpush1.bf16.msra.mxu0 0
        %990 = vmatprep.subr.bf16.mxu0 0
        %991 = vmatpush1.bf16.msra.mxu0 0
        %992 = vmatprep.subr.bf16.mxu0 0
        %993 = vmatpush1.bf16.msra.mxu0 %v976
        %994 = vmatprep.subr.bf16.mxu0 0
        %995 = vmatpush2.bf16.msra.mxu0 0
        %996 = vmatprep.subr.bf16.mxu0 0
        %997 = vmatpush2.bf16.msra.mxu0 0
        %998 = vmatprep.subr.bf16.mxu0 0
        %999 = vmatpush2.bf16.msra.mxu0 0
        %1000 = vmatprep.subr.bf16.mxu0 0
        %1001 = vmatpush2.bf16.msra.mxu0 0
        %1002 = vmatprep.subr.bf16.mxu0 0
        %1003 = vmatpush2.bf16.msra.mxu0 0
        %1004 = vmatprep.subr.bf16.mxu0 0
        %1005 = vmatpush2.bf16.msra.mxu0 0
        %1006 = vmatprep.subr.bf16.mxu0 0
        %1007 = vmatpush2.bf16.msra.mxu0 0
        %1008 = vmatprep.subr.bf16.mxu0 0
        %1009 = vmatpush2.bf16.msra.mxu0 0
        %1010 = vmatprep.mubr.bf16.mxu0 0
        %1011 = vmatmul.mubr.bf16.gmra.mxu0 %v973
        %v1012 = vpop.f32.mrf.mxu0
        %v1013 = vadd.f32 %v967, %v1012
        %v1014 = vpop.f32.mrf.mxu0
        %v1015 = vpop.f32.mrf.mxu0
        %v1016 = vpop.f32.mrf.mxu0
        %1017 = vdwg.mxu0
        %1018 = vrot.lane.b32.xlu0 %v693, 112
        %v1019 = vpop.permute.xlu0 %1018
        %1020 = vrot.lane.b32.xlu0 %v702, 112
        %v1021 = vpop.permute.xlu0 %1020
        %v1023 = vsel %vm703, %v1019, 0
        %v1026 = vsel %vm703, %v1021, 0
        %1028 = vmatprep.subr.bf16.mxu0 0
        %1029 = vmatpush1.bf16.xpose.msra.mxu0 0
        %1030 = vmatprep.subr.bf16.mxu0 0
        %1031 = vmatpush1.bf16.xpose.msra.mxu0 0
        %1032 = vmatprep.subr.bf16.mxu0 0
        %1033 = vmatpush1.bf16.xpose.msra.mxu0 0
        %1034 = vmatprep.subr.bf16.mxu0 0
        %1035 = vmatpush1.bf16.xpose.msra.mxu0 0
        %1036 = vmatprep.subr.bf16.mxu0 0
        %1037 = vmatpush1.bf16.xpose.msra.mxu0 0
        %1038 = vmatprep.subr.bf16.mxu0 0
        %1039 = vmatpush1.bf16.xpose.msra.mxu0 0
        %1040 = vmatprep.subr.bf16.mxu0 0
        %1041 = vmatpush1.bf16.xpose.msra.mxu0 0
        %1042 = vmatprep.subr.bf16.mxu0 0
        %1043 = vmatpush1.bf16.xpose.msra.mxu0 %v1026
        %1044 = vmatprep.subr.bf16.mxu0 0
        %1045 = vmatpush2.bf16.xpose.msra.mxu0 0
        %1046 = vmatprep.subr.bf16.mxu0 0
        %1047 = vmatpush2.bf16.xpose.msra.mxu0 0
        %1048 = vmatprep.subr.bf16.mxu0 0
        %1049 = vmatpush2.bf16.xpose.msra.mxu0 0
        %1050 = vmatprep.subr.bf16.mxu0 0
        %1051 = vmatpush2.bf16.xpose.msra.mxu0 0
        %1052 = vmatprep.subr.bf16.mxu0 0
        %1053 = vmatpush2.bf16.xpose.msra.mxu0 0
        %1054 = vmatprep.subr.bf16.mxu0 0
        %1055 = vmatpush2.bf16.xpose.msra.mxu0 0
        %1056 = vmatprep.subr.bf16.mxu0 0
        %1057 = vmatpush2.bf16.xpose.msra.mxu0 0
        %1058 = vmatprep.subr.bf16.mxu0 0
        %1059 = vmatpush2.bf16.xpose.msra.mxu0 0
        %1060 = vmatprep.mubr.bf16.mxu0 0
        %1061 = vmatmul.mubr.bf16.gmra.mxu0 %v1023
        %v1062 = vpop.f32.mrf.mxu0
        %v1063 = vadd.f32 0.0, %v1062
        %v1064 = vpop.f32.mrf.mxu0
        %v1065 = vpop.f32.mrf.mxu0
        %v1066 = vpop.f32.mrf.mxu0
        %1067 = vdwg.mxu0
        %v1068 = vsel %vm750, %v1063, -inf
        %1069 = vmax.xlane.f32.xlu0 %v1068
        %v1070 = vpop.xlane.xlu0 %1069
        %v1071 = vsub.f32 %v1063, %v1070
        %v1072 = vmul.f32 %v1071, 1.442695
        %v1073 = vpow.pop %v1072
        %v1074 = vsel %vm750, %v1073, 0.0
        %1075 = vadd.xlane.f32.xlu0 %v1074
        %v1076 = vpop.xlane.xlu0 %1075
        %v1077 = vpack.c.bf16 %v1073, %v1073
        %1078 = vrot.lane.b32.xlu0 %v765, 112
        %v1079 = vpop.permute.xlu0 %1078
        %v1082 = vsel %vm750, %v1077, 0
        %1084 = vmatprep.subr.bf16.mxu0 0
        %1085 = vmatpush1.bf16.msra.mxu0 0
        %1086 = vmatprep.subr.bf16.mxu0 0
        %1087 = vmatpush1.bf16.msra.mxu0 0
        %1088 = vmatprep.subr.bf16.mxu0 0
        %1089 = vmatpush1.bf16.msra.mxu0 0
        %1090 = vmatprep.subr.bf16.mxu0 0
        %1091 = vmatpush1.bf16.msra.mxu0 0
        %1092 = vmatprep.subr.bf16.mxu0 0
        %1093 = vmatpush1.bf16.msra.mxu0 0
        %1094 = vmatprep.subr.bf16.mxu0 0
        %1095 = vmatpush1.bf16.msra.mxu0 0
        %1096 = vmatprep.subr.bf16.mxu0 0
        %1097 = vmatpush1.bf16.msra.mxu0 0
        %1098 = vmatprep.subr.bf16.mxu0 0
        %1099 = vmatpush1.bf16.msra.mxu0 %v1079
        %1100 = vmatprep.subr.bf16.mxu0 0
        %1101 = vmatpush2.bf16.msra.mxu0 0
        %1102 = vmatprep.subr.bf16.mxu0 0
        %1103 = vmatpush2.bf16.msra.mxu0 0
        %1104 = vmatprep.subr.bf16.mxu0 0
        %1105 = vmatpush2.bf16.msra.mxu0 0
        %1106 = vmatprep.subr.bf16.mxu0 0
        %1107 = vmatpush2.bf16.msra.mxu0 0
        %1108 = vmatprep.subr.bf16.mxu0 0
        %1109 = vmatpush2.bf16.msra.mxu0 0
        %1110 = vmatprep.subr.bf16.mxu0 0
        %1111 = vmatpush2.bf16.msra.mxu0 0
        %1112 = vmatprep.subr.bf16.mxu0 0
        %1113 = vmatpush2.bf16.msra.mxu0 0
        %1114 = vmatprep.subr.bf16.mxu0 0
        %1115 = vmatpush2.bf16.msra.mxu0 0
        %1116 = vmatprep.mubr.bf16.mxu0 0
        %1117 = vmatmul.mubr.bf16.gmra.mxu0 %v1082
        %v1118 = vpop.f32.mrf.mxu0
        %v1119 = vadd.f32 0.0, %v1118
        %v1120 = vpop.f32.mrf.mxu0
        %v1121 = vpop.f32.mrf.mxu0
        %v1122 = vpop.f32.mrf.mxu0
        %1123 = vdwg.mxu0
        %v1124 = vrcp.pop %v1076
        %v1125 = vmul.f32 %v1119, %v1124
        %v1126 = vld [vmem:[%s9 + $0x8] sm:$0xf]
        %v1127 = vpack.c.bf16 %v1125, %v1125
        %v1129 = vsel %vm703, %v1127, 0
        %v1132 = vsel %vm928, %v1126, 0
        %1134 = vmatprep.subr.bf16.mxu0 0
        %1135 = vmatpush1.bf16.msra.mxu0 0
        %1136 = vmatprep.subr.bf16.mxu0 0
        %1137 = vmatpush1.bf16.msra.mxu0 0
        %1138 = vmatprep.subr.bf16.mxu0 0
        %1139 = vmatpush1.bf16.msra.mxu0 0
        %1140 = vmatprep.subr.bf16.mxu0 0
        %1141 = vmatpush1.bf16.msra.mxu0 0
        %1142 = vmatprep.subr.bf16.mxu0 0
        %1143 = vmatpush1.bf16.msra.mxu0 0
        %1144 = vmatprep.subr.bf16.mxu0 0
        %1145 = vmatpush1.bf16.msra.mxu0 0
        %1146 = vmatprep.subr.bf16.mxu0 0
        %1147 = vmatpush1.bf16.msra.mxu0 0
        %1148 = vmatprep.subr.bf16.mxu0 0
        %1149 = vmatpush1.bf16.msra.mxu0 %v1132
        %1150 = vmatprep.subr.bf16.mxu0 0
        %1151 = vmatpush2.bf16.msra.mxu0 0
        %1152 = vmatprep.subr.bf16.mxu0 0
        %1153 = vmatpush2.bf16.msra.mxu0 0
        %1154 = vmatprep.subr.bf16.mxu0 0
        %1155 = vmatpush2.bf16.msra.mxu0 0
        %1156 = vmatprep.subr.bf16.mxu0 0
        %1157 = vmatpush2.bf16.msra.mxu0 0
        %1158 = vmatprep.subr.bf16.mxu0 0
        %1159 = vmatpush2.bf16.msra.mxu0 0
        %1160 = vmatprep.subr.bf16.mxu0 0
        %1161 = vmatpush2.bf16.msra.mxu0 0
        %1162 = vmatprep.subr.bf16.mxu0 0
        %1163 = vmatpush2.bf16.msra.mxu0 0
        %1164 = vmatprep.subr.bf16.mxu0 0
        %1165 = vmatpush2.bf16.msra.mxu0 0
        %1166 = vmatprep.mubr.bf16.mxu0 0
        %1167 = vmatmul.mubr.bf16.gmra.mxu0 %v1129
        %v1168 = vpop.f32.mrf.mxu0
        %v1169 = vadd.f32 0.0, %v1168
        %v1170 = vpop.f32.mrf.mxu0
        %v1171 = vpop.f32.mrf.mxu0
        %v1172 = vpop.f32.mrf.mxu0
        %1173 = vdwg.mxu0
        %v1174 = vadd.f32 %v1013, %v1169
        %1175 = vrot.lane.b32.xlu0 %v693, 104
        %v1176 = vpop.permute.xlu0 %1175
        %1177 = vrot.lane.b32.xlu0 %v702, 104
        %v1178 = vpop.permute.xlu0 %1177
        %v1180 = vsel %vm703, %v1176, 0
        %v1183 = vsel %vm703, %v1178, 0
        %1185 = vmatprep.subr.bf16.mxu0 0
        %1186 = vmatpush1.bf16.xpose.msra.mxu0 0
        %1187 = vmatprep.subr.bf16.mxu0 0
        %1188 = vmatpush1.bf16.xpose.msra.mxu0 0
        %1189 = vmatprep.subr.bf16.mxu0 0
        %1190 = vmatpush1.bf16.xpose.msra.mxu0 0
        %1191 = vmatprep.subr.bf16.mxu0 0
        %1192 = vmatpush1.bf16.xpose.msra.mxu0 0
        %1193 = vmatprep.subr.bf16.mxu0 0
        %1194 = vmatpush1.bf16.xpose.msra.mxu0 0
        %1195 = vmatprep.subr.bf16.mxu0 0
        %1196 = vmatpush1.bf16.xpose.msra.mxu0 0
        %1197 = vmatprep.subr.bf16.mxu0 0
        %1198 = vmatpush1.bf16.xpose.msra.mxu0 0
        %1199 = vmatprep.subr.bf16.mxu0 0
        %1200 = vmatpush1.bf16.xpose.msra.mxu0 %v1183
        %1201 = vmatprep.subr.bf16.mxu0 0
        %1202 = vmatpush2.bf16.xpose.msra.mxu0 0
        %1203 = vmatprep.subr.bf16.mxu0 0
        %1204 = vmatpush2.bf16.xpose.msra.mxu0 0
        %1205 = vmatprep.subr.bf16.mxu0 0
        %1206 = vmatpush2.bf16.xpose.msra.mxu0 0
        %1207 = vmatprep.subr.bf16.mxu0 0
        %1208 = vmatpush2.bf16.xpose.msra.mxu0 0
        %1209 = vmatprep.subr.bf16.mxu0 0
        %1210 = vmatpush2.bf16.xpose.msra.mxu0 0
        %1211 = vmatprep.subr.bf16.mxu0 0
        %1212 = vmatpush2.bf16.xpose.msra.mxu0 0
        %1213 = vmatprep.subr.bf16.mxu0 0
        %1214 = vmatpush2.bf16.xpose.msra.mxu0 0
        %1215 = vmatprep.subr.bf16.mxu0 0
        %1216 = vmatpush2.bf16.xpose.msra.mxu0 0
        %1217 = vmatprep.mubr.bf16.mxu0 0
        %1218 = vmatmul.mubr.bf16.gmra.mxu0 %v1180
        %v1219 = vpop.f32.mrf.mxu0
        %v1220 = vadd.f32 0.0, %v1219
        %v1221 = vpop.f32.mrf.mxu0
        %v1222 = vpop.f32.mrf.mxu0
        %v1223 = vpop.f32.mrf.mxu0
        %1224 = vdwg.mxu0
        %v1225 = vsel %vm750, %v1220, -inf
        %1226 = vmax.xlane.f32.xlu0 %v1225
        %v1227 = vpop.xlane.xlu0 %1226
        %v1228 = vsub.f32 %v1220, %v1227
        %v1229 = vmul.f32 %v1228, 1.442695
        %v1230 = vpow.pop %v1229
        %v1231 = vsel %vm750, %v1230, 0.0
        %1232 = vadd.xlane.f32.xlu0 %v1231
        %v1233 = vpop.xlane.xlu0 %1232
        %v1234 = vpack.c.bf16 %v1230, %v1230
        %1235 = vrot.lane.b32.xlu0 %v765, 104
        %v1236 = vpop.permute.xlu0 %1235
        %v1239 = vsel %vm750, %v1234, 0
        %1241 = vmatprep.subr.bf16.mxu0 0
        %1242 = vmatpush1.bf16.msra.mxu0 0
        %1243 = vmatprep.subr.bf16.mxu0 0
        %1244 = vmatpush1.bf16.msra.mxu0 0
        %1245 = vmatprep.subr.bf16.mxu0 0
        %1246 = vmatpush1.bf16.msra.mxu0 0
        %1247 = vmatprep.subr.bf16.mxu0 0
        %1248 = vmatpush1.bf16.msra.mxu0 0
        %1249 = vmatprep.subr.bf16.mxu0 0
        %1250 = vmatpush1.bf16.msra.mxu0 0
        %1251 = vmatprep.subr.bf16.mxu0 0
        %1252 = vmatpush1.bf16.msra.mxu0 0
        %1253 = vmatprep.subr.bf16.mxu0 0
        %1254 = vmatpush1.bf16.msra.mxu0 0
        %1255 = vmatprep.subr.bf16.mxu0 0
        %1256 = vmatpush1.bf16.msra.mxu0 %v1236
        %1257 = vmatprep.subr.bf16.mxu0 0
        %1258 = vmatpush2.bf16.msra.mxu0 0
        %1259 = vmatprep.subr.bf16.mxu0 0
        %1260 = vmatpush2.bf16.msra.mxu0 0
        %1261 = vmatprep.subr.bf16.mxu0 0
        %1262 = vmatpush2.bf16.msra.mxu0 0
        %1263 = vmatprep.subr.bf16.mxu0 0
        %1264 = vmatpush2.bf16.msra.mxu0 0
        %1265 = vmatprep.subr.bf16.mxu0 0
        %1266 = vmatpush2.bf16.msra.mxu0 0
        %1267 = vmatprep.subr.bf16.mxu0 0
        %1268 = vmatpush2.bf16.msra.mxu0 0
        %1269 = vmatprep.subr.bf16.mxu0 0
        %1270 = vmatpush2.bf16.msra.mxu0 0
        %1271 = vmatprep.subr.bf16.mxu0 0
        %1272 = vmatpush2.bf16.msra.mxu0 0
        %1273 = vmatprep.mubr.bf16.mxu0 0
        %1274 = vmatmul.mubr.bf16.gmra.mxu0 %v1239
        %v1275 = vpop.f32.mrf.mxu0
        %v1276 = vadd.f32 0.0, %v1275
        %v1277 = vpop.f32.mrf.mxu0
        %v1278 = vpop.f32.mrf.mxu0
        %v1279 = vpop.f32.mrf.mxu0
        %1280 = vdwg.mxu0
        %v1281 = vrcp.pop %v1233
        %v1282 = vmul.f32 %v1276, %v1281
        %v1283 = vld [vmem:[%s9 + $0xc] sm:$0xf]
        %v1284 = vpack.c.bf16 %v1282, %v1282
        %v1286 = vsel %vm703, %v1284, 0
        %v1289 = vsel %vm928, %v1283, 0
        %1291 = vmatprep.subr.bf16.mxu0 0
        %1292 = vmatpush1.bf16.msra.mxu0 0
        %1293 = vmatprep.subr.bf16.mxu0 0
        %1294 = vmatpush1.bf16.msra.mxu0 0
        %1295 = vmatprep.subr.bf16.mxu0 0
        %1296 = vmatpush1.bf16.msra.mxu0 0
        %1297 = vmatprep.subr.bf16.mxu0 0
        %1298 = vmatpush1.bf16.msra.mxu0 0
        %1299 = vmatprep.subr.bf16.mxu0 0
        %1300 = vmatpush1.bf16.msra.mxu0 0
        %1301 = vmatprep.subr.bf16.mxu0 0
        %1302 = vmatpush1.bf16.msra.mxu0 0
        %1303 = vmatprep.subr.bf16.mxu0 0
        %1304 = vmatpush1.bf16.msra.mxu0 0
        %1305 = vmatprep.subr.bf16.mxu0 0
        %1306 = vmatpush1.bf16.msra.mxu0 %v1289
        %1307 = vmatprep.subr.bf16.mxu0 0
        %1308 = vmatpush2.bf16.msra.mxu0 0
        %1309 = vmatprep.subr.bf16.mxu0 0
        %1310 = vmatpush2.bf16.msra.mxu0 0
        %1311 = vmatprep.subr.bf16.mxu0 0
        %1312 = vmatpush2.bf16.msra.mxu0 0
        %1313 = vmatprep.subr.bf16.mxu0 0
        %1314 = vmatpush2.bf16.msra.mxu0 0
        %1315 = vmatprep.subr.bf16.mxu0 0
        %1316 = vmatpush2.bf16.msra.mxu0 0
        %1317 = vmatprep.subr.bf16.mxu0 0
        %1318 = vmatpush2.bf16.msra.mxu0 0
        %1319 = vmatprep.subr.bf16.mxu0 0
        %1320 = vmatpush2.bf16.msra.mxu0 0
        %1321 = vmatprep.subr.bf16.mxu0 0
        %1322 = vmatpush2.bf16.msra.mxu0 0
        %1323 = vmatprep.mubr.bf16.mxu0 0
        %1324 = vmatmul.mubr.bf16.gmra.mxu0 %v1286
        %v1325 = vpop.f32.mrf.mxu0
        %v1326 = vadd.f32 0.0, %v1325
        %v1327 = vpop.f32.mrf.mxu0
        %v1328 = vpop.f32.mrf.mxu0
        %v1329 = vpop.f32.mrf.mxu0
        %1330 = vdwg.mxu0
        %v1331 = vadd.f32 %v1174, %v1326
        %v1332 = vld [vmem:[%s10] sm:$0x1]
        %v1334 = vlaneseq
        %v1335 = vshrl.u32 %v1334, 7
        %v1336 = vsub.s32 0, %v1335
        %v1337 = vrot.slane %v1332, %v1336
        %v1339 = vadd.f32 %v1331, %v1337
        %1340 = vst.msk [vmem:[%s431] sm:$0xff] %vm649, %v1339
        %s1341 = sand.u32 %s295, 1
        %s1342 = scalar_lea.sflag [#allocation5], %s1341
        %s1343 = sand.u32 %s295, 1
        %s1344 = smul.addr %s1343, 8
        %s1345 = scalar_lea.vmem [#allocation4], %s1344
        // Predicated region
        $region69: #{mha_pallas.1} parent=63 // pred_check
          %p1346 = pneg %p305
        $region70: #{mha_pallas.1} parent=63 // pred_check_branch
          %1348 = sbr.rel (%p1346) target = $region72
        $region71: #{mha_pallas.1} parent=63 // pred_region
          %s1350 = ssub.s32 128, 128
          %1351 = vsyncadd %s1342, %s1350
          %s1352 = smul.addr %s29, 2
          %s1353 = sadd.s32 %s30, %s1352
          %s1354 = smul.addr %s1353, 128
          %s1355 = scalar_lea.hbm %s11, %s1354
          %s1357 = sshll.u32 %s1345, 4
          %s1358 = int_to_ptr.vmem [resolvable:$true] %s1357
          %1360 = dma.vmem_to_hbm [thread:$0]  %s1358, 128, %s1355, %s1342
        $region72: #{mha_pallas.1} parent=63 // pred_fallthru
          _
      $region64: #{mha_pallas.1} parent=5 // pred_fallthru
        _
      %p1361 = scmp.le.s32.totalorder 2, %s20
      // Predicated region
      $region73: #{mha_pallas.1} parent=5 // pred_check
        %p1362 = pneg %p1361
      $region74: #{mha_pallas.1} parent=5 // pred_check_branch
        %1364 = sbr.rel (%p1362) target = $region76
      $region75: #{mha_pallas.1} parent=5 // pred_region
        %s1365 = ssub.s32 %s20, 2
        // Predicated region
        $region77: #{mha_pallas.1} parent=75 // pred_check
          %p1366 = pneg %p311
        $region78: #{mha_pallas.1} parent=75 // pred_check_branch
          %1368 = sbr.rel (%p1366) target = $region80
        $region79: #{mha_pallas.1} parent=75 // pred_region
          %s1369 = sand.u32 %s296, 1
          %s1370 = scalar_lea.sflag [#allocation5], %s1369
          %s1371 = sand.u32 %s296, 1
          %s1372 = smul.addr %s1371, 8
          %s1373 = scalar_lea.vmem [#allocation4], %s1372
          %1374 = dma.done %s1370, 128
        $region80: #{mha_pallas.1} parent=75 // pred_fallthru
          _
      $region76: #{mha_pallas.1} parent=5 // pred_fallthru
        _
    $region6: #{mha_pallas.1} parent=1 // loop_footer
      %s24 = sadd.s32 1, %s20
    $region7: #{mha_pallas.1} parent=1 // loop_footer_branch
      %19 = sbr.rel target = $region3
    $region8: #{mha_pallas.1} parent=1 // loop_exit
      _
    %1375 = vsyncpa [#allocation5], 1
    %s1376 = scalar_lea.sflag [#allocation5], 1
    %1377 = vsyncpa %s1376, 1

</llo_original>
